<compile_context>
chip_gen: v7x
topology: tpu7x:2x2x1
jax: 0.10.0
libtpu: 0.0.40
codegen_flags: <defaults>
</compile_context>

<pallas_src>
import functools

import jax
import jax.numpy as jnp
from jax.experimental import pallas as pl
from jax.experimental.pallas import tpu as pltpu

# Plain Python floats (NOT jnp arrays) so the kernels never close over traced
# constants — module-level jnp.float32(...) was the previous compile failure.
_BIG = 3.0e38        # sentinel for running minima; only used in min/where
_PAD_COORD = 1.0e17  # sentinel coordinate for padded points: 3*(1e17)^2 ~ 3e34
                     # stays finite in f32 and is >> any real squared distance


def _round_up(x, m):
    return (x + m - 1) // m * m


def _device_kind():
    try:
        return jax.devices()[0].device_kind.lower()
    except Exception:
        return ""


def _default_vmem_limit():
    kind = _device_kind()
    if "v7" in kind:
        return 56 * 1024 * 1024        # v7x: only 64 MiB physical per TC
    if any(g in kind for g in ("v2", "v3", "v4", "v5", "v6")):
        return 100 * 1024 * 1024       # 128 MiB physical on v5e/v6e
    return 48 * 1024 * 1024            # unknown backend / interpret: be safe


# ---------------------------------------------------------------------------
# General (tiled) path: grid = (B, N tiles, M tiles), reduction axis (M) last.
# ---------------------------------------------------------------------------
def _chamfer_tiled_kernel(x_ref, yt_ref, out1_ref, out2_ref, acc1_ref,
                          d2min_ref, *, n, m, lane_chunk):
    # x_ref    : (1, TN, 3)   cloud-1 tile, points on sublanes
    # yt_ref   : (1, 3, TM)   cloud-2 tile (transposed), points lane-dense
    # out1_ref : (1, 1, 1)    per-batch running sum of dist1 (resident block)
    # out2_ref : (1, 1, 1)    per-batch running sum of dist2 (resident block)
    # acc1_ref : (TN, 1)      running row-min over M tiles (dist1)
    # d2min_ref: (nj, 1, TM)  running col-min over N tiles (dist2), all M tiles
    i = pl.program_id(1)
    j = pl.program_id(2)
    ni = pl.num_programs(1)
    nj = pl.num_programs(2)

    tn = x_ref.shape[1]
    tm = yt_ref.shape[2]
    mask_rows = (n % tn) != 0    # static Python bools -> masks only when needed
    mask_cols = (m % tm) != 0

    @pl.when(jnp.logical_and(i == 0, j == 0))
    def _init_outputs():
        out1_ref[...] = jnp.zeros_like(out1_ref)
        out2_ref[...] = jnp.zeros_like(out2_ref)

    @pl.when(j == 0)
    def _init_acc1():
        acc1_ref[...] = jnp.full(acc1_ref.shape, _BIG, acc1_ref.dtype)

    @pl.when(i == 0)
    def _init_d2():
        d2min_ref[j] = jnp.full((1, tm), _BIG, jnp.float32)

    x = x_ref[0]                                   # (TN, 3)
    x0 = x[:, 0:1]                                 # hoisted sublane columns
    x1 = x[:, 1:2]
    x2 = x[:, 2:3]

    # Pairwise squared distances computed directly on the VPU. The M-tile is
    # processed in lane chunks so the (TN, TM) distance tile never exists as a
    # full VMEM temporary (padded points carry sentinel coordinates, so no
    # masking is needed here).
    row_min = jnp.full((tn, 1), _BIG, jnp.float32)
    col_parts = []
    for c in range(tm // lane_chunk):              # static, short, unrolled
        sl = pl.ds(c * lane_chunk, lane_chunk)
        y0 = yt_ref[0, 0:1, sl]                    # (1, lane_chunk)
        y1 = yt_ref[0, 1:2, sl]
        y2 = yt_ref[0, 2:3, sl]
        d0 = x0 - y0
        d = d0 * d0
        d1 = x1 - y1
        d = d + d1 * d1
        d2 = x2 - y2
        d = d + d2 * d2                            # (TN, lane_chunk)
        row_min = jnp.minimum(row_min, jnp.min(d, axis=1, keepdims=True))
        col_parts.append(jnp.min(d, axis=0, keepdims=True))
    if len(col_parts) == 1:
        col_min = col_parts[0]                     # (1, TM)
    else:
        col_min = jnp.concatenate(col_parts, axis=1)

    # ---- dist1: running min over the M (j) tiles for this N tile ------------
    acc1_ref[...] = jnp.minimum(acc1_ref[...], row_min)

    @pl.when(j == nj - 1)
    def _finish_dist1():
        r = acc1_ref[...]
        if mask_rows:   # sentinel-padded rows carry huge (or 0) minima: drop them
            row_valid = (i * tn
                         + jax.lax.broadcasted_iota(jnp.int32, (tn, 1), 0)) < n
            r = jnp.where(row_valid, r, 0.0)
        out1_ref[...] = out1_ref[...] + jnp.sum(r)

    # ---- dist2: running min over the N (i) tiles, resident over all M tiles --
    d2min_ref[j] = jnp.minimum(d2min_ref[j], col_min)

    @pl.when(i == ni - 1)
    def _finish_dist2():
        c2 = d2min_ref[j]
        if mask_cols:
            col_valid = (j * tm
                         + jax.lax.broadcasted_iota(jnp.int32, (1, tm), 1)) < m
            c2 = jnp.where(col_valid, c2, 0.0)
        out2_ref[...] = out2_ref[...] + jnp.sum(c2)


# ---------------------------------------------------------------------------
# Small-cloud path: both clouds fit in one tile -> pack G batches per step.
# ---------------------------------------------------------------------------
def _chamfer_packed_kernel(x_ref, yt_ref, out1_ref, out2_ref, *, n, m):
    # x_ref  : (G, TN, 3)   TN == padded N (single tile)
    # yt_ref : (G, 3, TM)   TM == padded M (single tile)
    # out*   : (G, 1, 1)    per-batch dist sums
    tn = x_ref.shape[1]
    tm = yt_ref.shape[2]

    x = x_ref[...]
    yt = yt_ref[...]
    d = None
    for k in range(3):
        diff = x[:, :, k:k + 1] - yt[:, k:k + 1, :]     # (G, TN, TM)
        d = diff * diff if d is None else d + diff * diff

    row_min = jnp.min(d, axis=2, keepdims=True)         # (G, TN, 1)
    col_min = jnp.min(d, axis=1, keepdims=True)         # (G, 1, TM)

    if (n % tn) != 0:
        rv = (jax.lax.broadcasted_iota(jnp.int32, (tn, 1), 0) < n)[None]
        row_min = jnp.where(rv, row_min, 0.0)
    if (m % tm) != 0:
        cv = (jax.lax.broadcasted_iota(jnp.int32, (1, tm), 1) < m)[None]
        col_min = jnp.where(cv, col_min, 0.0)

    # Sentinel-padded batch elements (if any) are all-zero distances -> their
    # sums are exactly 0 and do not contaminate the final reduction.
    out1_ref[...] = jnp.sum(row_min, axis=1, keepdims=True)
    out2_ref[...] = jnp.sum(col_min, axis=2, keepdims=True)


def chamfer_distance_l2(xyz1, xyz2, *, tn=None, tm=None, lane_chunk=None,
                        ignore_zeros=False):
    """Chamfer-L2 loss = mean(dist1) + mean(dist2), via a Pallas TPU kernel."""
    if ignore_zeros:
        # TODO(synk): ignore_zeros (batch_size==1) filtering of all-zero points
        # is not implemented in the Pallas path (default module config only).
        raise NotImplementedError("ignore_zeros=True is not supported")

    xyz1 = jnp.asarray(xyz1, jnp.float32)
    xyz2 = jnp.asarray(xyz2, jnp.float32)
    B, N, D = xyz1.shape
    B2, M, D2 = xyz2.shape
    assert D == 3 and D2 == 3 and B == B2

    # Large default tiles amortize the fixed per-grid-step overhead; the
    # chunked lane loop keeps VMEM use modest even on v7x (64 MiB / TC).
    if tn is None:
        tn = 1024
    if tm is None:
        tm = 2048
    tn = _round_up(min(tn, _round_up(N, 8)), 8)        # sublane multiple
    tm = _round_up(min(tm, _round_up(M, 128)), 128)    # lane multiple

    n_pad = _round_up(N, tn)
    m_pad = _round_up(M, tm)
    ni = n_pad // tn
    nj = m_pad // tm

    # Sentinel padding: padded points are "infinitely far", so no per-element
    # masking is needed in the hot loop (only cheap finish-branch masks).
    x = jnp.pad(xyz1, ((0, 0), (0, n_pad - N), (0, 0)),
                constant_values=_PAD_COORD)
    yt = jnp.pad(jnp.transpose(xyz2, (0, 2, 1)),       # (B, 3, M_pad) lane-dense
                 ((0, 0), (0, 0), (0, m_pad - M)),
                 constant_values=_PAD_COORD)

    vmem_limit = _default_vmem_limit()

    if ni == 1 and nj == 1:
        # -------- small-cloud regime: pack G batch elements per grid step ----
        bytes_per_batch = tn * tm * 4
        g = max(1, min(B, (4 * 1024 * 1024) // max(bytes_per_batch, 1), 16))
        b_pad = _round_up(B, g)
        if b_pad != B:
            x = jnp.pad(x, ((0, b_pad - B), (0, 0), (0, 0)),
                        constant_values=_PAD_COORD)
            yt = jnp.pad(yt, ((0, b_pad - B), (0, 0), (0, 0)),
                         constant_values=_PAD_COORD)

        kernel = functools.partial(_chamfer_packed_kernel, n=N, m=M)
        sum1, sum2 = pl.pallas_call(
            kernel,
            out_shape=(jax.ShapeDtypeStruct((b_pad, 1, 1), jnp.float32),
                       jax.ShapeDtypeStruct((b_pad, 1, 1), jnp.float32)),
            grid_spec=pltpu.PrefetchScalarGridSpec(
                num_scalar_prefetch=0,
                grid=(b_pad // g,),
                in_specs=[
                    pl.BlockSpec((g, tn, 3), lambda b: (b, 0, 0)),
                    pl.BlockSpec((g, 3, tm), lambda b: (b, 0, 0)),
                ],
                out_specs=[
                    pl.BlockSpec((g, 1, 1), lambda b: (b, 0, 0)),
                    pl.BlockSpec((g, 1, 1), lambda b: (b, 0, 0)),
                ],
            ),
            compiler_params=pltpu.CompilerParams(
                dimension_semantics=("parallel",),
                vmem_limit_bytes=vmem_limit),
        )(x, yt)
    else:
        # -------- general tiled path -----------------------------------------
        if lane_chunk is None:
            lane_chunk = 512
        lane_chunk = max(128, (min(lane_chunk, tm) // 128) * 128)
        while tm % lane_chunk != 0:                    # tm is a multiple of 128
            lane_chunk -= 128

        # TODO(synk): on v7x (2 TensorCores/chip) with B == 1, a second
        # "parallel" split over the N-tile axis (per-core partial minima merged
        # in plain JAX) would keep both cores busy; not implemented here.
        # TODO(synk): for very asymmetric clouds (M >> N) the resident
        # (nj, 1, tm) col-min scratch (8x sublane padding) can be shrunk by
        # swapping the dist1/dist2 roles of xyz1/xyz2 so it scales with min(N, M).
        kernel = functools.partial(_chamfer_tiled_kernel, n=N, m=M,
                                   lane_chunk=lane_chunk)
        sum1, sum2 = pl.pallas_call(
            kernel,
            out_shape=(jax.ShapeDtypeStruct((B, 1, 1), jnp.float32),
                       jax.ShapeDtypeStruct((B, 1, 1), jnp.float32)),
            grid_spec=pltpu.PrefetchScalarGridSpec(
                num_scalar_prefetch=0,
                grid=(B, ni, nj),
                in_specs=[
                    pl.BlockSpec((1, tn, 3), lambda b, i, j: (b, i, 0)),
                    pl.BlockSpec((1, 3, tm), lambda b, i, j: (b, 0, j)),
                ],
                out_specs=[
                    pl.BlockSpec((1, 1, 1), lambda b, i, j: (b, 0, 0)),
                    pl.BlockSpec((1, 1, 1), lambda b, i, j: (b, 0, 0)),
                ],
                scratch_shapes=[
                    pltpu.VMEM((tn, 1), jnp.float32),      # dist1 running row-min
                    pltpu.VMEM((nj, 1, tm), jnp.float32),  # dist2 running col-min
                ],
            ),
            compiler_params=pltpu.CompilerParams(
                dimension_semantics=("parallel", "arbitrary", "arbitrary"),
                vmem_limit_bytes=vmem_limit),
        )(x, yt)

    mean1 = jnp.sum(sum1) / (B * N)
    mean2 = jnp.sum(sum2) / (B * M)
    return mean1 + mean2


def _reference(xyz1, xyz2):
    # Plain-JAX reference (direct coordinate differences, like the CUDA kernel).
    diff = xyz1[:, :, None, :] - xyz2[:, None, :, :]   # (B, N, M, 3)
    d = jnp.sum(diff * diff, axis=-1)                  # (B, N, M)
    return jnp.mean(jnp.min(d, axis=2)) + jnp.mean(jnp.min(d, axis=1))


if __name__ == "__main__":
    key = jax.random.PRNGKey(0)
    k1, k2 = jax.random.split(key)
    B, N, M, D = 2, 200, 300, 3
    xyz1 = jax.random.normal(k1, (B, N, D), dtype=jnp.float32)
    xyz2 = jax.random.normal(k2, (B, M, D), dtype=jnp.float32)

    ref = _reference(xyz1, xyz2)

    # Default tiles -> small-cloud path (both clouds in one tile, batches
    # packed into a single grid step).
    out_a = jax.jit(chamfer_distance_l2)(xyz1, xyz2)
    jax.block_until_ready(out_a)
    assert jnp.allclose(out_a, ref, atol=1e-5, rtol=1e-5), (out_a, ref)

    # Small explicit tiles -> general multi-tile path: sentinel padding,
    # running-min accumulation over N/M tiles, multi-chunk lane loop, and
    # finish-branch row/column masking.
    out_b = jax.jit(functools.partial(
        chamfer_distance_l2, tn=64, tm=256, lane_chunk=128))(xyz1, xyz2)
    jax.block_until_ready(out_b)
    assert jnp.allclose(out_b, ref, atol=1e-5, rtol=1e-5), (out_b, ref)

    print("KERNEL_OK")
</pallas_src>

<mosaic_0001>
module attributes {stable_mosaic.version = 11 : i64} {
  func.func @_chamfer_packed_kernel(%arg0: i32, %arg1: memref<2x200x3xf32, #tpu.memory_space<vmem>>, %arg2: memref<2x3x384xf32, #tpu.memory_space<vmem>>, %arg3: memref<2x1x1xf32, #tpu.memory_space<vmem>>, %arg4: memref<2x1x1xf32, #tpu.memory_space<vmem>>) attributes {dimension_semantics = [#tpu.dimension_semantics<parallel>], iteration_bounds = array<i64: 1>, scalar_prefetch = 0 : i64, scratch_operands = 0 : i64, tpu.core_type = #tpu.core_type<tc>, window_params = [{transform_indices = @transform_0, window_bounds = array<i64: 2, 200, 3>}, {transform_indices = @transform_1, window_bounds = array<i64: 2, 3, 384>}, {transform_indices = @transform_2, window_bounds = array<i64: 2, 1, 1>}, {transform_indices = @transform_3, window_bounds = array<i64: 2, 1, 1>}]} {
    %c0 = arith.constant 0 : index
    %c0_0 = arith.constant 0 : index
    %c0_1 = arith.constant 0 : index
    %0 = vector.load %arg1[%c0, %c0_0, %c0_1] : memref<2x200x3xf32, #tpu.memory_space<vmem>>, vector<2x200x3xf32>
    %c0_2 = arith.constant 0 : index
    %c0_3 = arith.constant 0 : index
    %c0_4 = arith.constant 0 : index
    %1 = vector.load %arg2[%c0_2, %c0_3, %c0_4] : memref<2x3x384xf32, #tpu.memory_space<vmem>>, vector<2x3x384xf32>
    %2 = vector.extract_strided_slice %0 {offsets = [0, 0, 0], sizes = [2, 200, 1], strides = [1, 1, 1]} : vector<2x200x3xf32> to vector<2x200x1xf32>
    %3 = vector.extract_strided_slice %1 {offsets = [0, 0, 0], sizes = [2, 1, 384], strides = [1, 1, 1]} : vector<2x3x384xf32> to vector<2x1x384xf32>
    %4 = vector.broadcast %2 : vector<2x200x1xf32> to vector<2x200x384xf32>
    %5 = vector.broadcast %3 : vector<2x1x384xf32> to vector<2x200x384xf32>
    %6 = arith.subf %4, %5 : vector<2x200x384xf32>
    %7 = arith.mulf %6, %6 : vector<2x200x384xf32>
    %8 = vector.extract_strided_slice %0 {offsets = [0, 0, 1], sizes = [2, 200, 1], strides = [1, 1, 1]} : vector<2x200x3xf32> to vector<2x200x1xf32>
    %9 = vector.extract_strided_slice %1 {offsets = [0, 1, 0], sizes = [2, 1, 384], strides = [1, 1, 1]} : vector<2x3x384xf32> to vector<2x1x384xf32>
    %10 = vector.broadcast %8 : vector<2x200x1xf32> to vector<2x200x384xf32>
    %11 = vector.broadcast %9 : vector<2x1x384xf32> to vector<2x200x384xf32>
    %12 = arith.subf %10, %11 : vector<2x200x384xf32>
    %13 = arith.mulf %12, %12 : vector<2x200x384xf32>
    %14 = arith.addf %7, %13 : vector<2x200x384xf32>
    %15 = vector.extract_strided_slice %0 {offsets = [0, 0, 2], sizes = [2, 200, 1], strides = [1, 1, 1]} : vector<2x200x3xf32> to vector<2x200x1xf32>
    %16 = vector.extract_strided_slice %1 {offsets = [0, 2, 0], sizes = [2, 1, 384], strides = [1, 1, 1]} : vector<2x3x384xf32> to vector<2x1x384xf32>
    %17 = vector.broadcast %15 : vector<2x200x1xf32> to vector<2x200x384xf32>
    %18 = vector.broadcast %16 : vector<2x1x384xf32> to vector<2x200x384xf32>
    %19 = arith.subf %17, %18 : vector<2x200x384xf32>
    %20 = arith.mulf %19, %19 : vector<2x200x384xf32>
    %21 = arith.addf %14, %20 : vector<2x200x384xf32>
    %cst = arith.constant dense<0x7F800000> : vector<2x200xf32>
    %22 = vector.multi_reduction <minimumf>, %21, %cst [2] : vector<2x200x384xf32> to vector<2x200xf32>
    %23 = vector.shape_cast %22 : vector<2x200xf32> to vector<2x200x1xf32>
    %cst_5 = arith.constant dense<0x7F800000> : vector<2x384xf32>
    %24 = vector.multi_reduction <minimumf>, %21, %cst_5 [1] : vector<2x200x384xf32> to vector<2x384xf32>
    %25 = vector.shape_cast %24 : vector<2x384xf32> to vector<2x1x384xf32>
    %26 = tpu.iota {dimensions = array<i32: 1>} : vector<1x384xi32>
    %c300_i32 = arith.constant 300 : i32
    %27 = vector.broadcast %c300_i32 : i32 to vector<1x384xi32>
    %28 = arith.cmpi slt, %26, %27 : vector<1x384xi32>
    %29 = vector.shape_cast %28 : vector<1x384xi1> to vector<1x1x384xi1>
    %cst_6 = arith.constant 0.000000e+00 : f32
    %30 = vector.shape_cast %29 : vector<1x1x384xi1> to vector<1x1x384xi1>
    %31 = vector.broadcast %30 : vector<1x1x384xi1> to vector<2x1x384xi1>
    %32 = vector.broadcast %cst_6 : f32 to vector<2x1x384xf32>
    %33 = arith.select %31, %25, %32 : vector<2x1x384xi1>, vector<2x1x384xf32>
    %cst_7 = arith.constant dense<0.000000e+00> : vector<2x1xf32>
    %34 = vector.multi_reduction <add>, %23, %cst_7 [1] : vector<2x200x1xf32> to vector<2x1xf32>
    %35 = vector.shape_cast %34 : vector<2x1xf32> to vector<2x1x1xf32>
    %c0_8 = arith.constant 0 : index
    %c0_9 = arith.constant 0 : index
    %c0_10 = arith.constant 0 : index
    %36 = vector.load %arg3[%c0_8, %c0_9, %c0_10] : memref<2x1x1xf32, #tpu.memory_space<vmem>>, vector<2x1x1xf32>
    tpu.vector_store %arg3[%c0_8, %c0_9, %c0_10], %35 {strides = array<i32>} : memref<2x1x1xf32, #tpu.memory_space<vmem>>, vector<2x1x1xf32>,
    %cst_11 = arith.constant dense<0.000000e+00> : vector<2x1xf32>
    %37 = vector.multi_reduction <add>, %33, %cst_11 [2] : vector<2x1x384xf32> to vector<2x1xf32>
    %38 = vector.shape_cast %37 : vector<2x1xf32> to vector<2x1x1xf32>
    %c0_12 = arith.constant 0 : index
    %c0_13 = arith.constant 0 : index
    %c0_14 = arith.constant 0 : index
    %39 = vector.load %arg4[%c0_12, %c0_13, %c0_14] : memref<2x1x1xf32, #tpu.memory_space<vmem>>, vector<2x1x1xf32>
    tpu.vector_store %arg4[%c0_12, %c0_13, %c0_14], %38 {strides = array<i32>} : memref<2x1x1xf32, #tpu.memory_space<vmem>>, vector<2x1x1xf32>,
    return
  }
  func.func @transform_0(%arg0: i32) -> (i32, i32, i32) {
    %c0_i32 = arith.constant 0 : i32
    %c0_i32_0 = arith.constant 0 : i32
    %c0_i32_1 = arith.constant 0 : i32
    return %arg0, %c0_i32, %c0_i32_0 : i32, i32, i32
  }
  func.func @transform_1(%arg0: i32) -> (i32, i32, i32) {
    %c0_i32 = arith.constant 0 : i32
    %c0_i32_0 = arith.constant 0 : i32
    %c0_i32_1 = arith.constant 0 : i32
    return %arg0, %c0_i32, %c0_i32_0 : i32, i32, i32
  }
  func.func @transform_2(%arg0: i32) -> (i32, i32, i32) {
    %c0_i32 = arith.constant 0 : i32
    %c0_i32_0 = arith.constant 0 : i32
    %c0_i32_1 = arith.constant 0 : i32
    return %arg0, %c0_i32, %c0_i32_0 : i32, i32, i32
  }
  func.func @transform_3(%arg0: i32) -> (i32, i32, i32) {
    %c0_i32 = arith.constant 0 : i32
    %c0_i32_0 = arith.constant 0 : i32
    %c0_i32_1 = arith.constant 0 : i32
    return %arg0, %c0_i32, %c0_i32_0 : i32, i32, i32
  }
}

</mosaic_0001>

<llo_original>
// kernel: chamfer_distance_l2.1
$region0: #{chamfer_distance_l2.1}
  #allocation0 [shape = 'u32[]', space=smem, size = 0x4, offset = 0x4, fixed_abs, tag = 'smem constant byte address 0x4 - core index']
  #allocation1 [shape = 'u32[144,128]{1,0:T(1,128)}', space=vmem, size = 0x12000, scoped, tag = 'internal scratch']
  %s0 = inlined_call_operand.vmem [shape: f32[2,200,3], index: 0, kind: input, shape index: {}]
  %s1 = inlined_call_operand.vmem [shape: f32[2,3,384], index: 1, kind: input, shape index: {}]
  %s2 = inlined_call_operand.vmem [shape: f32[2,1,1], index: 2, kind: output, shape index: {0}]
  %s3 = inlined_call_operand.vmem [shape: f32[2,1,1], index: 3, kind: output, shape index: {1}]
  %4 = xla_tuple %s2, %s3
  %s5 = sld [smem:[#allocation0]]
  $region26: #{chamfer_distance_l2.1} parent=0
    _
  %s7 = ssub.s32 1, %s5
  %s8 = scalar_select 0, %s7, %s5
  // Predicated region
  $region2: #{chamfer_distance_l2.1} parent=0 // pred_check
    _
  $region3: #{chamfer_distance_l2.1} parent=0 // pred_check_branch
    %10 = sbr.rel (0) target = $region5
  $region4: #{chamfer_distance_l2.1} parent=0 // pred_region
    _
  $region5: #{chamfer_distance_l2.1} parent=0 // pred_fallthru
    _
  // Predicated region
  $region6: #{chamfer_distance_l2.1} parent=0 // pred_check
    _
  $region7: #{chamfer_distance_l2.1} parent=0 // pred_check_branch
    %12 = sbr.rel (0) target = $region9
  $region8: #{chamfer_distance_l2.1} parent=0 // pred_region
    _
  $region9: #{chamfer_distance_l2.1} parent=0 // pred_fallthru
    _
  %v13 = vld [vmem:[%s0] sm:$0xff]
  %v14 = vld [vmem:[%s0 + $0x8] sm:$0xff]
  %v15 = vld [vmem:[%s0 + $0x10] sm:$0xff]
  %v16 = vld [vmem:[%s0 + $0x18] sm:$0xff]
  %v17 = vld [vmem:[%s0 + $0x20] sm:$0xff]
  %v18 = vld [vmem:[%s0 + $0x28] sm:$0xff]
  %v19 = vld [vmem:[%s0 + $0x30] sm:$0xff]
  %v20 = vld [vmem:[%s0 + $0x38] sm:$0xff]
  %v21 = vld [vmem:[%s0 + $0x40] sm:$0xff]
  %v22 = vld [vmem:[%s0 + $0x48] sm:$0xff]
  %v23 = vld [vmem:[%s0 + $0x50] sm:$0xff]
  %v24 = vld [vmem:[%s0 + $0x58] sm:$0xff]
  %v25 = vld [vmem:[%s0 + $0x60] sm:$0xff]
  %v26 = vld [vmem:[%s0 + $0x68] sm:$0xff]
  %v27 = vld [vmem:[%s0 + $0x70] sm:$0xff]
  %v28 = vld [vmem:[%s0 + $0x78] sm:$0xff]
  %v29 = vld [vmem:[%s0 + $0x80] sm:$0xff]
  %v30 = vld [vmem:[%s0 + $0x88] sm:$0xff]
  %v31 = vld [vmem:[%s0 + $0x90] sm:$0xff]
  %v32 = vld [vmem:[%s0 + $0x98] sm:$0xff]
  %v33 = vld [vmem:[%s0 + $0xa0] sm:$0xff]
  %v34 = vld [vmem:[%s0 + $0xa8] sm:$0xff]
  %v35 = vld [vmem:[%s0 + $0xb0] sm:$0xff]
  %v36 = vld [vmem:[%s0 + $0xb8] sm:$0xff]
  %v37 = vld [vmem:[%s0 + $0xc0] sm:$0xff]
  %v38 = vld [vmem:[%s0 + $0xc8] sm:$0xff]
  %v39 = vld [vmem:[%s0 + $0xd0] sm:$0xff]
  %v40 = vld [vmem:[%s0 + $0xd8] sm:$0xff]
  %v41 = vld [vmem:[%s0 + $0xe0] sm:$0xff]
  %v42 = vld [vmem:[%s0 + $0xe8] sm:$0xff]
  %v43 = vld [vmem:[%s0 + $0xf0] sm:$0xff]
  %v44 = vld [vmem:[%s0 + $0xf8] sm:$0xff]
  %v45 = vld [vmem:[%s0 + $0x100] sm:$0xff]
  %v46 = vld [vmem:[%s0 + $0x108] sm:$0xff]
  %v47 = vld [vmem:[%s0 + $0x110] sm:$0xff]
  %v48 = vld [vmem:[%s0 + $0x118] sm:$0xff]
  %v49 = vld [vmem:[%s0 + $0x120] sm:$0xff]
  %v50 = vld [vmem:[%s0 + $0x128] sm:$0xff]
  %v51 = vld [vmem:[%s0 + $0x130] sm:$0xff]
  %v52 = vld [vmem:[%s0 + $0x138] sm:$0xff]
  %v53 = vld [vmem:[%s0 + $0x140] sm:$0xff]
  %v54 = vld [vmem:[%s0 + $0x148] sm:$0xff]
  %v55 = vld [vmem:[%s0 + $0x150] sm:$0xff]
  %v56 = vld [vmem:[%s0 + $0x158] sm:$0xff]
  %v57 = vld [vmem:[%s0 + $0x160] sm:$0xff]
  %v58 = vld [vmem:[%s0 + $0x168] sm:$0xff]
  %v59 = vld [vmem:[%s0 + $0x170] sm:$0xff]
  %v60 = vld [vmem:[%s0 + $0x178] sm:$0xff]
  %v61 = vld [vmem:[%s0 + $0x180] sm:$0xff]
  %v62 = vld [vmem:[%s0 + $0x188] sm:$0xff]
  %v63 = vld [vmem:[%s1] sm:$0x77]
  %v64 = vld [vmem:[%s1 + $0x8] sm:$0x7]
  %v65 = vld [vmem:[%s1 + $0xc] sm:$0x77]
  %v66 = vld [vmem:[%s1 + $0x14] sm:$0x7]
  %68 = vset.pattern.permute.xlu0 0
  %69 = vperm.xlu0 %68, %v13
  %v70 = vpop.permute.xlu0 %69
  %73 = vset.pattern.permute.xlu0 0
  %74 = vperm.xlu0 %73, %v14
  %v75 = vpop.permute.xlu0 %74
  %78 = vset.pattern.permute.xlu0 0
  %79 = vperm.xlu0 %78, %v15
  %v80 = vpop.permute.xlu0 %79
  %83 = vset.pattern.permute.xlu0 0
  %84 = vperm.xlu0 %83, %v16
  %v85 = vpop.permute.xlu0 %84
  %88 = vset.pattern.permute.xlu0 0
  %89 = vperm.xlu0 %88, %v17
  %v90 = vpop.permute.xlu0 %89
  %93 = vset.pattern.permute.xlu0 0
  %94 = vperm.xlu0 %93, %v18
  %v95 = vpop.permute.xlu0 %94
  %98 = vset.pattern.permute.xlu0 0
  %99 = vperm.xlu0 %98, %v19
  %v100 = vpop.permute.xlu0 %99
  %103 = vset.pattern.permute.xlu0 0
  %104 = vperm.xlu0 %103, %v20
  %v105 = vpop.permute.xlu0 %104
  %108 = vset.pattern.permute.xlu0 0
  %109 = vperm.xlu0 %108, %v21
  %v110 = vpop.permute.xlu0 %109
  %113 = vset.pattern.permute.xlu0 0
  %114 = vperm.xlu0 %113, %v22
  %v115 = vpop.permute.xlu0 %114
  %118 = vset.pattern.permute.xlu0 0
  %119 = vperm.xlu0 %118, %v23
  %v120 = vpop.permute.xlu0 %119
  %123 = vset.pattern.permute.xlu0 0
  %124 = vperm.xlu0 %123, %v24
  %v125 = vpop.permute.xlu0 %124
  %128 = vset.pattern.permute.xlu0 0
  %129 = vperm.xlu0 %128, %v25
  %v130 = vpop.permute.xlu0 %129
  %133 = vset.pattern.permute.xlu0 0
  %134 = vperm.xlu0 %133, %v26
  %v135 = vpop.permute.xlu0 %134
  %138 = vset.pattern.permute.xlu0 0
  %139 = vperm.xlu0 %138, %v27
  %v140 = vpop.permute.xlu0 %139
  %143 = vset.pattern.permute.xlu0 0
  %144 = vperm.xlu0 %143, %v28
  %v145 = vpop.permute.xlu0 %144
  %148 = vset.pattern.permute.xlu0 0
  %149 = vperm.xlu0 %148, %v29
  %v150 = vpop.permute.xlu0 %149
  %153 = vset.pattern.permute.xlu0 0
  %154 = vperm.xlu0 %153, %v30
  %v155 = vpop.permute.xlu0 %154
  %158 = vset.pattern.permute.xlu0 0
  %159 = vperm.xlu0 %158, %v31
  %v160 = vpop.permute.xlu0 %159
  %163 = vset.pattern.permute.xlu0 0
  %164 = vperm.xlu0 %163, %v32
  %v165 = vpop.permute.xlu0 %164
  %168 = vset.pattern.permute.xlu0 0
  %169 = vperm.xlu0 %168, %v33
  %v170 = vpop.permute.xlu0 %169
  %173 = vset.pattern.permute.xlu0 0
  %174 = vperm.xlu0 %173, %v34
  %v175 = vpop.permute.xlu0 %174
  %178 = vset.pattern.permute.xlu0 0
  %179 = vperm.xlu0 %178, %v35
  %v180 = vpop.permute.xlu0 %179
  %183 = vset.pattern.permute.xlu0 0
  %184 = vperm.xlu0 %183, %v36
  %v185 = vpop.permute.xlu0 %184
  %188 = vset.pattern.permute.xlu0 0
  %189 = vperm.xlu0 %188, %v37
  %v190 = vpop.permute.xlu0 %189
  %193 = vset.pattern.permute.xlu0 0
  %194 = vperm.xlu0 %193, %v38
  %v195 = vpop.permute.xlu0 %194
  %198 = vset.pattern.permute.xlu0 0
  %199 = vperm.xlu0 %198, %v39
  %v200 = vpop.permute.xlu0 %199
  %203 = vset.pattern.permute.xlu0 0
  %204 = vperm.xlu0 %203, %v40
  %v205 = vpop.permute.xlu0 %204
  %208 = vset.pattern.permute.xlu0 0
  %209 = vperm.xlu0 %208, %v41
  %v210 = vpop.permute.xlu0 %209
  %213 = vset.pattern.permute.xlu0 0
  %214 = vperm.xlu0 %213, %v42
  %v215 = vpop.permute.xlu0 %214
  %218 = vset.pattern.permute.xlu0 0
  %219 = vperm.xlu0 %218, %v43
  %v220 = vpop.permute.xlu0 %219
  %223 = vset.pattern.permute.xlu0 0
  %224 = vperm.xlu0 %223, %v44
  %v225 = vpop.permute.xlu0 %224
  %228 = vset.pattern.permute.xlu0 0
  %229 = vperm.xlu0 %228, %v45
  %v230 = vpop.permute.xlu0 %229
  %233 = vset.pattern.permute.xlu0 0
  %234 = vperm.xlu0 %233, %v46
  %v235 = vpop.permute.xlu0 %234
  %238 = vset.pattern.permute.xlu0 0
  %239 = vperm.xlu0 %238, %v47
  %v240 = vpop.permute.xlu0 %239
  %243 = vset.pattern.permute.xlu0 0
  %244 = vperm.xlu0 %243, %v48
  %v245 = vpop.permute.xlu0 %244
  %248 = vset.pattern.permute.xlu0 0
  %249 = vperm.xlu0 %248, %v49
  %v250 = vpop.permute.xlu0 %249
  %253 = vset.pattern.permute.xlu0 0
  %254 = vperm.xlu0 %253, %v50
  %v255 = vpop.permute.xlu0 %254
  %258 = vset.pattern.permute.xlu0 0
  %259 = vperm.xlu0 %258, %v51
  %v260 = vpop.permute.xlu0 %259
  %263 = vset.pattern.permute.xlu0 0
  %264 = vperm.xlu0 %263, %v52
  %v265 = vpop.permute.xlu0 %264
  %268 = vset.pattern.permute.xlu0 0
  %269 = vperm.xlu0 %268, %v53
  %v270 = vpop.permute.xlu0 %269
  %273 = vset.pattern.permute.xlu0 0
  %274 = vperm.xlu0 %273, %v54
  %v275 = vpop.permute.xlu0 %274
  %278 = vset.pattern.permute.xlu0 0
  %279 = vperm.xlu0 %278, %v55
  %v280 = vpop.permute.xlu0 %279
  %283 = vset.pattern.permute.xlu0 0
  %284 = vperm.xlu0 %283, %v56
  %v285 = vpop.permute.xlu0 %284
  %288 = vset.pattern.permute.xlu0 0
  %289 = vperm.xlu0 %288, %v57
  %v290 = vpop.permute.xlu0 %289
  %293 = vset.pattern.permute.xlu0 0
  %294 = vperm.xlu0 %293, %v58
  %v295 = vpop.permute.xlu0 %294
  %298 = vset.pattern.permute.xlu0 0
  %299 = vperm.xlu0 %298, %v59
  %v300 = vpop.permute.xlu0 %299
  %303 = vset.pattern.permute.xlu0 0
  %304 = vperm.xlu0 %303, %v60
  %v305 = vpop.permute.xlu0 %304
  %308 = vset.pattern.permute.xlu0 0
  %309 = vperm.xlu0 %308, %v61
  %v310 = vpop.permute.xlu0 %309
  %313 = vset.pattern.permute.xlu0 0
  %314 = vperm.xlu0 %313, %v62
  %v315 = vpop.permute.xlu0 %314
  %v321 = vlaneseq
  %v322 = vshrl.u32 %v321, 7
  %v323 = vsub.s32 0, %v322
  %v324 = vrot.slane %v63, %v323
  %v325 = vlaneseq
  %v326 = vshrl.u32 %v325, 7
  %v327 = vsub.s32 4, %v326
  %v328 = vrot.slane %v63, %v327
  %v329 = vlaneseq
  %v330 = vshrl.u32 %v329, 7
  %v331 = vsub.s32 0, %v330
  %v332 = vrot.slane %v64, %v331
  %v333 = vlaneseq
  %v334 = vshrl.u32 %v333, 7
  %v335 = vsub.s32 0, %v334
  %v336 = vrot.slane %v65, %v335
  %v337 = vlaneseq
  %v338 = vshrl.u32 %v337, 7
  %v339 = vsub.s32 4, %v338
  %v340 = vrot.slane %v65, %v339
  %v341 = vlaneseq
  %v342 = vshrl.u32 %v341, 7
  %v343 = vsub.s32 0, %v342
  %v344 = vrot.slane %v66, %v343
  %v351 = vlaneseq
  %v352 = vshrl.u32 %v351, 7
  %v353 = vsub.s32 0, %v352
  %v354 = vrot.slane %v324, %v353
  %v355 = vlaneseq
  %v356 = vshrl.u32 %v355, 7
  %v357 = vsub.s32 0, %v356
  %v358 = vrot.slane %v328, %v357
  %v359 = vlaneseq
  %v360 = vshrl.u32 %v359, 7
  %v361 = vsub.s32 0, %v360
  %v362 = vrot.slane %v332, %v361
  %v363 = vlaneseq
  %v364 = vshrl.u32 %v363, 7
  %v365 = vsub.s32 0, %v364
  %v366 = vrot.slane %v336, %v365
  %v367 = vlaneseq
  %v368 = vshrl.u32 %v367, 7
  %v369 = vsub.s32 0, %v368
  %v370 = vrot.slane %v340, %v369
  %v371 = vlaneseq
  %v372 = vshrl.u32 %v371, 7
  %v373 = vsub.s32 0, %v372
  %v374 = vrot.slane %v344, %v373
  %v375 = vsub.f32 %v70, %v354
  %v376 = vsub.f32 %v70, %v358
  %v377 = vsub.f32 %v70, %v362
  %v378 = vsub.f32 %v75, %v354
  %v379 = vsub.f32 %v75, %v358
  %v380 = vsub.f32 %v75, %v362
  %v381 = vsub.f32 %v80, %v354
  %v382 = vsub.f32 %v80, %v358
  %v383 = vsub.f32 %v80, %v362
  %v384 = vsub.f32 %v85, %v354
  %v385 = vsub.f32 %v85, %v358
  %v386 = vsub.f32 %v85, %v362
  %v387 = vsub.f32 %v90, %v354
  %v388 = vsub.f32 %v90, %v358
  %v389 = vsub.f32 %v90, %v362
  %v390 = vsub.f32 %v95, %v354
  %v391 = vsub.f32 %v95, %v358
  %v392 = vsub.f32 %v95, %v362
  %v393 = vsub.f32 %v100, %v354
  %v394 = vsub.f32 %v100, %v358
  %v395 = vsub.f32 %v100, %v362
  %v396 = vsub.f32 %v105, %v354
  %v397 = vsub.f32 %v105, %v358
  %v398 = vsub.f32 %v105, %v362
  %v399 = vsub.f32 %v110, %v354
  %v400 = vsub.f32 %v110, %v358
  %v401 = vsub.f32 %v110, %v362
  %v402 = vsub.f32 %v115, %v354
  %v403 = vsub.f32 %v115, %v358
  %v404 = vsub.f32 %v115, %v362
  %v405 = vsub.f32 %v120, %v354
  %v406 = vsub.f32 %v120, %v358
  %v407 = vsub.f32 %v120, %v362
  %v408 = vsub.f32 %v125, %v354
  %v409 = vsub.f32 %v125, %v358
  %v410 = vsub.f32 %v125, %v362
  %v411 = vsub.f32 %v130, %v354
  %v412 = vsub.f32 %v130, %v358
  %v413 = vsub.f32 %v130, %v362
  %v414 = vsub.f32 %v135, %v354
  %v415 = vsub.f32 %v135, %v358
  %v416 = vsub.f32 %v135, %v362
  %v417 = vsub.f32 %v140, %v354
  %v418 = vsub.f32 %v140, %v358
  %v419 = vsub.f32 %v140, %v362
  %v420 = vsub.f32 %v145, %v354
  %v421 = vsub.f32 %v145, %v358
  %v422 = vsub.f32 %v145, %v362
  %v423 = vsub.f32 %v150, %v354
  %v424 = vsub.f32 %v150, %v358
  %v425 = vsub.f32 %v150, %v362
  %v426 = vsub.f32 %v155, %v354
  %v427 = vsub.f32 %v155, %v358
  %v428 = vsub.f32 %v155, %v362
  %v429 = vsub.f32 %v160, %v354
  %v430 = vsub.f32 %v160, %v358
  %v431 = vsub.f32 %v160, %v362
  %v432 = vsub.f32 %v165, %v354
  %v433 = vsub.f32 %v165, %v358
  %v434 = vsub.f32 %v165, %v362
  %v435 = vsub.f32 %v170, %v354
  %v436 = vsub.f32 %v170, %v358
  %v437 = vsub.f32 %v170, %v362
  %v438 = vsub.f32 %v175, %v354
  %v439 = vsub.f32 %v175, %v358
  %v440 = vsub.f32 %v175, %v362
  %v441 = vsub.f32 %v180, %v354
  %v442 = vsub.f32 %v180, %v358
  %v443 = vsub.f32 %v180, %v362
  %v444 = vsub.f32 %v185, %v354
  %v445 = vsub.f32 %v185, %v358
  %v446 = vsub.f32 %v185, %v362
  %v447 = vsub.f32 %v190, %v354
  %v448 = vsub.f32 %v190, %v358
  %v449 = vsub.f32 %v190, %v362
  %v450 = vsub.f32 %v195, %v366
  %v451 = vsub.f32 %v195, %v370
  %v452 = vsub.f32 %v195, %v374
  %v453 = vsub.f32 %v200, %v366
  %v454 = vsub.f32 %v200, %v370
  %v455 = vsub.f32 %v200, %v374
  %v456 = vsub.f32 %v205, %v366
  %v457 = vsub.f32 %v205, %v370
  %v458 = vsub.f32 %v205, %v374
  %v459 = vsub.f32 %v210, %v366
  %v460 = vsub.f32 %v210, %v370
  %v461 = vsub.f32 %v210, %v374
  %v462 = vsub.f32 %v215, %v366
  %v463 = vsub.f32 %v215, %v370
  %v464 = vsub.f32 %v215, %v374
  %v465 = vsub.f32 %v220, %v366
  %v466 = vsub.f32 %v220, %v370
  %v467 = vsub.f32 %v220, %v374
  %v468 = vsub.f32 %v225, %v366
  %v469 = vsub.f32 %v225, %v370
  %v470 = vsub.f32 %v225, %v374
  %v471 = vsub.f32 %v230, %v366
  %v472 = vsub.f32 %v230, %v370
  %v473 = vsub.f32 %v230, %v374
  %v474 = vsub.f32 %v235, %v366
  %v475 = vsub.f32 %v235, %v370
  %v476 = vsub.f32 %v235, %v374
  %v477 = vsub.f32 %v240, %v366
  %v478 = vsub.f32 %v240, %v370
  %v479 = vsub.f32 %v240, %v374
  %v480 = vsub.f32 %v245, %v366
  %v481 = vsub.f32 %v245, %v370
  %v482 = vsub.f32 %v245, %v374
  %v483 = vsub.f32 %v250, %v366
  %v484 = vsub.f32 %v250, %v370
  %v485 = vsub.f32 %v250, %v374
  %v486 = vsub.f32 %v255, %v366
  %v487 = vsub.f32 %v255, %v370
  %v488 = vsub.f32 %v255, %v374
  %v489 = vsub.f32 %v260, %v366
  %v490 = vsub.f32 %v260, %v370
  %v491 = vsub.f32 %v260, %v374
  %v492 = vsub.f32 %v265, %v366
  %v493 = vsub.f32 %v265, %v370
  %v494 = vsub.f32 %v265, %v374
  %v495 = vsub.f32 %v270, %v366
  %v496 = vsub.f32 %v270, %v370
  %v497 = vsub.f32 %v270, %v374
  %v498 = vsub.f32 %v275, %v366
  %v499 = vsub.f32 %v275, %v370
  %v500 = vsub.f32 %v275, %v374
  %v501 = vsub.f32 %v280, %v366
  %v502 = vsub.f32 %v280, %v370
  %v503 = vsub.f32 %v280, %v374
  %v504 = vsub.f32 %v285, %v366
  %v505 = vsub.f32 %v285, %v370
  %v506 = vsub.f32 %v285, %v374
  %v507 = vsub.f32 %v290, %v366
  %v508 = vsub.f32 %v290, %v370
  %v509 = vsub.f32 %v290, %v374
  %v510 = vsub.f32 %v295, %v366
  %v511 = vsub.f32 %v295, %v370
  %v512 = vsub.f32 %v295, %v374
  %v513 = vsub.f32 %v300, %v366
  %v514 = vsub.f32 %v300, %v370
  %v515 = vsub.f32 %v300, %v374
  %v516 = vsub.f32 %v305, %v366
  %v517 = vsub.f32 %v305, %v370
  %v518 = vsub.f32 %v305, %v374
  %v519 = vsub.f32 %v310, %v366
  %v520 = vsub.f32 %v310, %v370
  %v521 = vsub.f32 %v310, %v374
  %v522 = vsub.f32 %v315, %v366
  %v523 = vsub.f32 %v315, %v370
  %v524 = vsub.f32 %v315, %v374
  %v525 = vmul.f32 %v375, %v375
  %v526 = vmul.f32 %v376, %v376
  %v527 = vmul.f32 %v377, %v377
  %v528 = vmul.f32 %v378, %v378
  %v529 = vmul.f32 %v379, %v379
  %v530 = vmul.f32 %v380, %v380
  %v531 = vmul.f32 %v381, %v381
  %v532 = vmul.f32 %v382, %v382
  %v533 = vmul.f32 %v383, %v383
  %v534 = vmul.f32 %v384, %v384
  %v535 = vmul.f32 %v385, %v385
  %v536 = vmul.f32 %v386, %v386
  %v537 = vmul.f32 %v387, %v387
  %v538 = vmul.f32 %v388, %v388
  %v539 = vmul.f32 %v389, %v389
  %v540 = vmul.f32 %v390, %v390
  %v541 = vmul.f32 %v391, %v391
  %v542 = vmul.f32 %v392, %v392
  %v543 = vmul.f32 %v393, %v393
  %v544 = vmul.f32 %v394, %v394
  %v545 = vmul.f32 %v395, %v395
  %v546 = vmul.f32 %v396, %v396
  %v547 = vmul.f32 %v397, %v397
  %v548 = vmul.f32 %v398, %v398
  %v549 = vmul.f32 %v399, %v399
  %v550 = vmul.f32 %v400, %v400
  %v551 = vmul.f32 %v401, %v401
  %v552 = vmul.f32 %v402, %v402
  %v553 = vmul.f32 %v403, %v403
  %v554 = vmul.f32 %v404, %v404
  %v555 = vmul.f32 %v405, %v405
  %v556 = vmul.f32 %v406, %v406
  %v557 = vmul.f32 %v407, %v407
  %v558 = vmul.f32 %v408, %v408
  %v559 = vmul.f32 %v409, %v409
  %v560 = vmul.f32 %v410, %v410
  %v561 = vmul.f32 %v411, %v411
  %v562 = vmul.f32 %v412, %v412
  %v563 = vmul.f32 %v413, %v413
  %v564 = vmul.f32 %v414, %v414
  %v565 = vmul.f32 %v415, %v415
  %v566 = vmul.f32 %v416, %v416
  %v567 = vmul.f32 %v417, %v417
  %v568 = vmul.f32 %v418, %v418
  %v569 = vmul.f32 %v419, %v419
  %v570 = vmul.f32 %v420, %v420
  %v571 = vmul.f32 %v421, %v421
  %v572 = vmul.f32 %v422, %v422
  %v573 = vmul.f32 %v423, %v423
  %v574 = vmul.f32 %v424, %v424
  %v575 = vmul.f32 %v425, %v425
  %v576 = vmul.f32 %v426, %v426
  %v577 = vmul.f32 %v427, %v427
  %v578 = vmul.f32 %v428, %v428
  %v579 = vmul.f32 %v429, %v429
  %v580 = vmul.f32 %v430, %v430
  %v581 = vmul.f32 %v431, %v431
  %v582 = vmul.f32 %v432, %v432
  %v583 = vmul.f32 %v433, %v433
  %v584 = vmul.f32 %v434, %v434
  %v585 = vmul.f32 %v435, %v435
  %v586 = vmul.f32 %v436, %v436
  %v587 = vmul.f32 %v437, %v437
  %v588 = vmul.f32 %v438, %v438
  %v589 = vmul.f32 %v439, %v439
  %v590 = vmul.f32 %v440, %v440
  %v591 = vmul.f32 %v441, %v441
  %v592 = vmul.f32 %v442, %v442
  %v593 = vmul.f32 %v443, %v443
  %v594 = vmul.f32 %v444, %v444
  %v595 = vmul.f32 %v445, %v445
  %v596 = vmul.f32 %v446, %v446
  %v597 = vmul.f32 %v447, %v447
  %v598 = vmul.f32 %v448, %v448
  %v599 = vmul.f32 %v449, %v449
  %v600 = vmul.f32 %v450, %v450
  %v601 = vmul.f32 %v451, %v451
  %v602 = vmul.f32 %v452, %v452
  %v603 = vmul.f32 %v453, %v453
  %v604 = vmul.f32 %v454, %v454
  %v605 = vmul.f32 %v455, %v455
  %v606 = vmul.f32 %v456, %v456
  %v607 = vmul.f32 %v457, %v457
  %v608 = vmul.f32 %v458, %v458
  %v609 = vmul.f32 %v459, %v459
  %v610 = vmul.f32 %v460, %v460
  %v611 = vmul.f32 %v461, %v461
  %v612 = vmul.f32 %v462, %v462
  %v613 = vmul.f32 %v463, %v463
  %v614 = vmul.f32 %v464, %v464
  %v615 = vmul.f32 %v465, %v465
  %v616 = vmul.f32 %v466, %v466
  %v617 = vmul.f32 %v467, %v467
  %v618 = vmul.f32 %v468, %v468
  %v619 = vmul.f32 %v469, %v469
  %v620 = vmul.f32 %v470, %v470
  %v621 = vmul.f32 %v471, %v471
  %v622 = vmul.f32 %v472, %v472
  %v623 = vmul.f32 %v473, %v473
  %v624 = vmul.f32 %v474, %v474
  %v625 = vmul.f32 %v475, %v475
  %v626 = vmul.f32 %v476, %v476
  %v627 = vmul.f32 %v477, %v477
  %v628 = vmul.f32 %v478, %v478
  %v629 = vmul.f32 %v479, %v479
  %v630 = vmul.f32 %v480, %v480
  %v631 = vmul.f32 %v481, %v481
  %v632 = vmul.f32 %v482, %v482
  %v633 = vmul.f32 %v483, %v483
  %v634 = vmul.f32 %v484, %v484
  %v635 = vmul.f32 %v485, %v485
  %v636 = vmul.f32 %v486, %v486
  %v637 = vmul.f32 %v487, %v487
  %v638 = vmul.f32 %v488, %v488
  %v639 = vmul.f32 %v489, %v489
  %v640 = vmul.f32 %v490, %v490
  %v641 = vmul.f32 %v491, %v491
  %v642 = vmul.f32 %v492, %v492
  %v643 = vmul.f32 %v493, %v493
  %v644 = vmul.f32 %v494, %v494
  %v645 = vmul.f32 %v495, %v495
  %v646 = vmul.f32 %v496, %v496
  %v647 = vmul.f32 %v497, %v497
  %v648 = vmul.f32 %v498, %v498
  %v649 = vmul.f32 %v499, %v499
  %v650 = vmul.f32 %v500, %v500
  %v651 = vmul.f32 %v501, %v501
  %v652 = vmul.f32 %v502, %v502
  %v653 = vmul.f32 %v503, %v503
  %v654 = vmul.f32 %v504, %v504
  %v655 = vmul.f32 %v505, %v505
  %v656 = vmul.f32 %v506, %v506
  %v657 = vmul.f32 %v507, %v507
  %v658 = vmul.f32 %v508, %v508
  %v659 = vmul.f32 %v509, %v509
  %v660 = vmul.f32 %v510, %v510
  %v661 = vmul.f32 %v511, %v511
  %v662 = vmul.f32 %v512, %v512
  %v663 = vmul.f32 %v513, %v513
  %v664 = vmul.f32 %v514, %v514
  %v665 = vmul.f32 %v515, %v515
  %v666 = vmul.f32 %v516, %v516
  %v667 = vmul.f32 %v517, %v517
  %v668 = vmul.f32 %v518, %v518
  %v669 = vmul.f32 %v519, %v519
  %v670 = vmul.f32 %v520, %v520
  %v671 = vmul.f32 %v521, %v521
  %v672 = vmul.f32 %v522, %v522
  %v673 = vmul.f32 %v523, %v523
  %v674 = vmul.f32 %v524, %v524
  %675 = vset.pattern.permute.xlu0 1
  %676 = vperm.xlu0 %675, %v13
  %v677 = vpop.permute.xlu0 %676
  %679 = vset.pattern.permute.xlu0 1
  %680 = vperm.xlu0 %679, %v14
  %v681 = vpop.permute.xlu0 %680
  %683 = vset.pattern.permute.xlu0 1
  %684 = vperm.xlu0 %683, %v15
  %v685 = vpop.permute.xlu0 %684
  %687 = vset.pattern.permute.xlu0 1
  %688 = vperm.xlu0 %687, %v16
  %v689 = vpop.permute.xlu0 %688
  %691 = vset.pattern.permute.xlu0 1
  %692 = vperm.xlu0 %691, %v17
  %v693 = vpop.permute.xlu0 %692
  %695 = vset.pattern.permute.xlu0 1
  %696 = vperm.xlu0 %695, %v18
  %v697 = vpop.permute.xlu0 %696
  %699 = vset.pattern.permute.xlu0 1
  %700 = vperm.xlu0 %699, %v19
  %v701 = vpop.permute.xlu0 %700
  %703 = vset.pattern.permute.xlu0 1
  %704 = vperm.xlu0 %703, %v20
  %v705 = vpop.permute.xlu0 %704
  %707 = vset.pattern.permute.xlu0 1
  %708 = vperm.xlu0 %707, %v21
  %v709 = vpop.permute.xlu0 %708
  %711 = vset.pattern.permute.xlu0 1
  %712 = vperm.xlu0 %711, %v22
  %v713 = vpop.permute.xlu0 %712
  %715 = vset.pattern.permute.xlu0 1
  %716 = vperm.xlu0 %715, %v23
  %v717 = vpop.permute.xlu0 %716
  %719 = vset.pattern.permute.xlu0 1
  %720 = vperm.xlu0 %719, %v24
  %v721 = vpop.permute.xlu0 %720
  %723 = vset.pattern.permute.xlu0 1
  %724 = vperm.xlu0 %723, %v25
  %v725 = vpop.permute.xlu0 %724
  %727 = vset.pattern.permute.xlu0 1
  %728 = vperm.xlu0 %727, %v26
  %v729 = vpop.permute.xlu0 %728
  %731 = vset.pattern.permute.xlu0 1
  %732 = vperm.xlu0 %731, %v27
  %v733 = vpop.permute.xlu0 %732
  %735 = vset.pattern.permute.xlu0 1
  %736 = vperm.xlu0 %735, %v28
  %v737 = vpop.permute.xlu0 %736
  %739 = vset.pattern.permute.xlu0 1
  %740 = vperm.xlu0 %739, %v29
  %v741 = vpop.permute.xlu0 %740
  %743 = vset.pattern.permute.xlu0 1
  %744 = vperm.xlu0 %743, %v30
  %v745 = vpop.permute.xlu0 %744
  %747 = vset.pattern.permute.xlu0 1
  %748 = vperm.xlu0 %747, %v31
  %v749 = vpop.permute.xlu0 %748
  %751 = vset.pattern.permute.xlu0 1
  %752 = vperm.xlu0 %751, %v32
  %v753 = vpop.permute.xlu0 %752
  %755 = vset.pattern.permute.xlu0 1
  %756 = vperm.xlu0 %755, %v33
  %v757 = vpop.permute.xlu0 %756
  %759 = vset.pattern.permute.xlu0 1
  %760 = vperm.xlu0 %759, %v34
  %v761 = vpop.permute.xlu0 %760
  %763 = vset.pattern.permute.xlu0 1
  %764 = vperm.xlu0 %763, %v35
  %v765 = vpop.permute.xlu0 %764
  %767 = vset.pattern.permute.xlu0 1
  %768 = vperm.xlu0 %767, %v36
  %v769 = vpop.permute.xlu0 %768
  %771 = vset.pattern.permute.xlu0 1
  %772 = vperm.xlu0 %771, %v37
  %v773 = vpop.permute.xlu0 %772
  %775 = vset.pattern.permute.xlu0 1
  %776 = vperm.xlu0 %775, %v38
  %v777 = vpop.permute.xlu0 %776
  %779 = vset.pattern.permute.xlu0 1
  %780 = vperm.xlu0 %779, %v39
  %v781 = vpop.permute.xlu0 %780
  %783 = vset.pattern.permute.xlu0 1
  %784 = vperm.xlu0 %783, %v40
  %v785 = vpop.permute.xlu0 %784
  %787 = vset.pattern.permute.xlu0 1
  %788 = vperm.xlu0 %787, %v41
  %v789 = vpop.permute.xlu0 %788
  %791 = vset.pattern.permute.xlu0 1
  %792 = vperm.xlu0 %791, %v42
  %v793 = vpop.permute.xlu0 %792
  %795 = vset.pattern.permute.xlu0 1
  %796 = vperm.xlu0 %795, %v43
  %v797 = vpop.permute.xlu0 %796
  %799 = vset.pattern.permute.xlu0 1
  %800 = vperm.xlu0 %799, %v44
  %v801 = vpop.permute.xlu0 %800
  %803 = vset.pattern.permute.xlu0 1
  %804 = vperm.xlu0 %803, %v45
  %v805 = vpop.permute.xlu0 %804
  %807 = vset.pattern.permute.xlu0 1
  %808 = vperm.xlu0 %807, %v46
  %v809 = vpop.permute.xlu0 %808
  %811 = vset.pattern.permute.xlu0 1
  %812 = vperm.xlu0 %811, %v47
  %v813 = vpop.permute.xlu0 %812
  %815 = vset.pattern.permute.xlu0 1
  %816 = vperm.xlu0 %815, %v48
  %v817 = vpop.permute.xlu0 %816
  %819 = vset.pattern.permute.xlu0 1
  %820 = vperm.xlu0 %819, %v49
  %v821 = vpop.permute.xlu0 %820
  %823 = vset.pattern.permute.xlu0 1
  %824 = vperm.xlu0 %823, %v50
  %v825 = vpop.permute.xlu0 %824
  %827 = vset.pattern.permute.xlu0 1
  %828 = vperm.xlu0 %827, %v51
  %v829 = vpop.permute.xlu0 %828
  %831 = vset.pattern.permute.xlu0 1
  %832 = vperm.xlu0 %831, %v52
  %v833 = vpop.permute.xlu0 %832
  %835 = vset.pattern.permute.xlu0 1
  %836 = vperm.xlu0 %835, %v53
  %v837 = vpop.permute.xlu0 %836
  %839 = vset.pattern.permute.xlu0 1
  %840 = vperm.xlu0 %839, %v54
  %v841 = vpop.permute.xlu0 %840
  %843 = vset.pattern.permute.xlu0 1
  %844 = vperm.xlu0 %843, %v55
  %v845 = vpop.permute.xlu0 %844
  %847 = vset.pattern.permute.xlu0 1
  %848 = vperm.xlu0 %847, %v56
  %v849 = vpop.permute.xlu0 %848
  %851 = vset.pattern.permute.xlu0 1
  %852 = vperm.xlu0 %851, %v57
  %v853 = vpop.permute.xlu0 %852
  %855 = vset.pattern.permute.xlu0 1
  %856 = vperm.xlu0 %855, %v58
  %v857 = vpop.permute.xlu0 %856
  %859 = vset.pattern.permute.xlu0 1
  %860 = vperm.xlu0 %859, %v59
  %v861 = vpop.permute.xlu0 %860
  %863 = vset.pattern.permute.xlu0 1
  %864 = vperm.xlu0 %863, %v60
  %v865 = vpop.permute.xlu0 %864
  %867 = vset.pattern.permute.xlu0 1
  %868 = vperm.xlu0 %867, %v61
  %v869 = vpop.permute.xlu0 %868
  %871 = vset.pattern.permute.xlu0 1
  %872 = vperm.xlu0 %871, %v62
  %v873 = vpop.permute.xlu0 %872
  %v875 = vlaneseq
  %v876 = vshrl.u32 %v875, 7
  %v877 = vsub.s32 1, %v876
  %v878 = vrot.slane %v63, %v877
  %v879 = vlaneseq
  %v880 = vshrl.u32 %v879, 7
  %v881 = vsub.s32 5, %v880
  %v882 = vrot.slane %v63, %v881
  %v883 = vlaneseq
  %v884 = vshrl.u32 %v883, 7
  %v885 = vsub.s32 1, %v884
  %v886 = vrot.slane %v64, %v885
  %v887 = vlaneseq
  %v888 = vshrl.u32 %v887, 7
  %v889 = vsub.s32 1, %v888
  %v890 = vrot.slane %v65, %v889
  %v891 = vlaneseq
  %v892 = vshrl.u32 %v891, 7
  %v893 = vsub.s32 5, %v892
  %v894 = vrot.slane %v65, %v893
  %v895 = vlaneseq
  %v896 = vshrl.u32 %v895, 7
  %v897 = vsub.s32 1, %v896
  %v898 = vrot.slane %v66, %v897
  %v905 = vlaneseq
  %v906 = vshrl.u32 %v905, 7
  %v907 = vsub.s32 1, %v906
  %v908 = vrot.slane %v878, %v907
  %v909 = vlaneseq
  %v910 = vshrl.u32 %v909, 7
  %v911 = vsub.s32 1, %v910
  %v912 = vrot.slane %v882, %v911
  %v913 = vlaneseq
  %v914 = vshrl.u32 %v913, 7
  %v915 = vsub.s32 1, %v914
  %v916 = vrot.slane %v886, %v915
  %v917 = vlaneseq
  %v918 = vshrl.u32 %v917, 7
  %v919 = vsub.s32 1, %v918
  %v920 = vrot.slane %v890, %v919
  %v921 = vlaneseq
  %v922 = vshrl.u32 %v921, 7
  %v923 = vsub.s32 1, %v922
  %v924 = vrot.slane %v894, %v923
  %v925 = vlaneseq
  %v926 = vshrl.u32 %v925, 7
  %v927 = vsub.s32 1, %v926
  %v928 = vrot.slane %v898, %v927
  %v929 = vsub.f32 %v677, %v908
  %v930 = vsub.f32 %v677, %v912
  %v931 = vsub.f32 %v677, %v916
  %v932 = vsub.f32 %v681, %v908
  %v933 = vsub.f32 %v681, %v912
  %v934 = vsub.f32 %v681, %v916
  %v935 = vsub.f32 %v685, %v908
  %v936 = vsub.f32 %v685, %v912
  %v937 = vsub.f32 %v685, %v916
  %v938 = vsub.f32 %v689, %v908
  %v939 = vsub.f32 %v689, %v912
  %v940 = vsub.f32 %v689, %v916
  %v941 = vsub.f32 %v693, %v908
  %v942 = vsub.f32 %v693, %v912
  %v943 = vsub.f32 %v693, %v916
  %v944 = vsub.f32 %v697, %v908
  %v945 = vsub.f32 %v697, %v912
  %v946 = vsub.f32 %v697, %v916
  %v947 = vsub.f32 %v701, %v908
  %v948 = vsub.f32 %v701, %v912
  %v949 = vsub.f32 %v701, %v916
  %v950 = vsub.f32 %v705, %v908
  %v951 = vsub.f32 %v705, %v912
  %v952 = vsub.f32 %v705, %v916
  %v953 = vsub.f32 %v709, %v908
  %v954 = vsub.f32 %v709, %v912
  %v955 = vsub.f32 %v709, %v916
  %v956 = vsub.f32 %v713, %v908
  %v957 = vsub.f32 %v713, %v912
  %v958 = vsub.f32 %v713, %v916
  %v959 = vsub.f32 %v717, %v908
  %v960 = vsub.f32 %v717, %v912
  %v961 = vsub.f32 %v717, %v916
  %v962 = vsub.f32 %v721, %v908
  %v963 = vsub.f32 %v721, %v912
  %v964 = vsub.f32 %v721, %v916
  %v965 = vsub.f32 %v725, %v908
  %v966 = vsub.f32 %v725, %v912
  %v967 = vsub.f32 %v725, %v916
  %v968 = vsub.f32 %v729, %v908
  %v969 = vsub.f32 %v729, %v912
  %v970 = vsub.f32 %v729, %v916
  %v971 = vsub.f32 %v733, %v908
  %v972 = vsub.f32 %v733, %v912
  %v973 = vsub.f32 %v733, %v916
  %v974 = vsub.f32 %v737, %v908
  %v975 = vsub.f32 %v737, %v912
  %v976 = vsub.f32 %v737, %v916
  %v977 = vsub.f32 %v741, %v908
  %v978 = vsub.f32 %v741, %v912
  %v979 = vsub.f32 %v741, %v916
  %v980 = vsub.f32 %v745, %v908
  %v981 = vsub.f32 %v745, %v912
  %v982 = vsub.f32 %v745, %v916
  %v983 = vsub.f32 %v749, %v908
  %v984 = vsub.f32 %v749, %v912
  %v985 = vsub.f32 %v749, %v916
  %v986 = vsub.f32 %v753, %v908
  %v987 = vsub.f32 %v753, %v912
  %v988 = vsub.f32 %v753, %v916
  %v989 = vsub.f32 %v757, %v908
  %v990 = vsub.f32 %v757, %v912
  %v991 = vsub.f32 %v757, %v916
  %v992 = vsub.f32 %v761, %v908
  %v993 = vsub.f32 %v761, %v912
  %v994 = vsub.f32 %v761, %v916
  %v995 = vsub.f32 %v765, %v908
  %v996 = vsub.f32 %v765, %v912
  %v997 = vsub.f32 %v765, %v916
  %v998 = vsub.f32 %v769, %v908
  %v999 = vsub.f32 %v769, %v912
  %v1000 = vsub.f32 %v769, %v916
  %v1001 = vsub.f32 %v773, %v908
  %v1002 = vsub.f32 %v773, %v912
  %v1003 = vsub.f32 %v773, %v916
  %v1004 = vsub.f32 %v777, %v920
  %v1005 = vsub.f32 %v777, %v924
  %v1006 = vsub.f32 %v777, %v928
  %v1007 = vsub.f32 %v781, %v920
  %v1008 = vsub.f32 %v781, %v924
  %v1009 = vsub.f32 %v781, %v928
  %v1010 = vsub.f32 %v785, %v920
  %v1011 = vsub.f32 %v785, %v924
  %v1012 = vsub.f32 %v785, %v928
  %v1013 = vsub.f32 %v789, %v920
  %v1014 = vsub.f32 %v789, %v924
  %v1015 = vsub.f32 %v789, %v928
  %v1016 = vsub.f32 %v793, %v920
  %v1017 = vsub.f32 %v793, %v924
  %v1018 = vsub.f32 %v793, %v928
  %v1019 = vsub.f32 %v797, %v920
  %v1020 = vsub.f32 %v797, %v924
  %v1021 = vsub.f32 %v797, %v928
  %v1022 = vsub.f32 %v801, %v920
  %v1023 = vsub.f32 %v801, %v924
  %v1024 = vsub.f32 %v801, %v928
  %v1025 = vsub.f32 %v805, %v920
  %v1026 = vsub.f32 %v805, %v924
  %v1027 = vsub.f32 %v805, %v928
  %v1028 = vsub.f32 %v809, %v920
  %v1029 = vsub.f32 %v809, %v924
  %v1030 = vsub.f32 %v809, %v928
  %v1031 = vsub.f32 %v813, %v920
  %v1032 = vsub.f32 %v813, %v924
  %v1033 = vsub.f32 %v813, %v928
  %v1034 = vsub.f32 %v817, %v920
  %v1035 = vsub.f32 %v817, %v924
  %v1036 = vsub.f32 %v817, %v928
  %v1037 = vsub.f32 %v821, %v920
  %v1038 = vsub.f32 %v821, %v924
  %v1039 = vsub.f32 %v821, %v928
  %v1040 = vsub.f32 %v825, %v920
  %v1041 = vsub.f32 %v825, %v924
  %v1042 = vsub.f32 %v825, %v928
  %v1043 = vsub.f32 %v829, %v920
  %v1044 = vsub.f32 %v829, %v924
  %v1045 = vsub.f32 %v829, %v928
  %v1046 = vsub.f32 %v833, %v920
  %v1047 = vsub.f32 %v833, %v924
  %v1048 = vsub.f32 %v833, %v928
  %v1049 = vsub.f32 %v837, %v920
  %v1050 = vsub.f32 %v837, %v924
  %v1051 = vsub.f32 %v837, %v928
  %v1052 = vsub.f32 %v841, %v920
  %v1053 = vsub.f32 %v841, %v924
  %v1054 = vsub.f32 %v841, %v928
  %v1055 = vsub.f32 %v845, %v920
  %v1056 = vsub.f32 %v845, %v924
  %v1057 = vsub.f32 %v845, %v928
  %v1058 = vsub.f32 %v849, %v920
  %v1059 = vsub.f32 %v849, %v924
  %v1060 = vsub.f32 %v849, %v928
  %v1061 = vsub.f32 %v853, %v920
  %v1062 = vsub.f32 %v853, %v924
  %v1063 = vsub.f32 %v853, %v928
  %v1064 = vsub.f32 %v857, %v920
  %v1065 = vsub.f32 %v857, %v924
  %v1066 = vsub.f32 %v857, %v928
  %v1067 = vsub.f32 %v861, %v920
  %v1068 = vsub.f32 %v861, %v924
  %v1069 = vsub.f32 %v861, %v928
  %v1070 = vsub.f32 %v865, %v920
  %v1071 = vsub.f32 %v865, %v924
  %v1072 = vsub.f32 %v865, %v928
  %v1073 = vsub.f32 %v869, %v920
  %v1074 = vsub.f32 %v869, %v924
  %v1075 = vsub.f32 %v869, %v928
  %v1076 = vsub.f32 %v873, %v920
  %v1077 = vsub.f32 %v873, %v924
  %v1078 = vsub.f32 %v873, %v928
  %v1079 = vmul.f32 %v929, %v929
  %v1080 = vmul.f32 %v930, %v930
  %v1081 = vmul.f32 %v931, %v931
  %v1082 = vmul.f32 %v932, %v932
  %v1083 = vmul.f32 %v933, %v933
  %v1084 = vmul.f32 %v934, %v934
  %v1085 = vmul.f32 %v935, %v935
  %v1086 = vmul.f32 %v936, %v936
  %v1087 = vmul.f32 %v937, %v937
  %v1088 = vmul.f32 %v938, %v938
  %v1089 = vmul.f32 %v939, %v939
  %v1090 = vmul.f32 %v940, %v940
  %v1091 = vmul.f32 %v941, %v941
  %v1092 = vmul.f32 %v942, %v942
  %v1093 = vmul.f32 %v943, %v943
  %v1094 = vmul.f32 %v944, %v944
  %v1095 = vmul.f32 %v945, %v945
  %v1096 = vmul.f32 %v946, %v946
  %v1097 = vmul.f32 %v947, %v947
  %v1098 = vmul.f32 %v948, %v948
  %v1099 = vmul.f32 %v949, %v949
  %v1100 = vmul.f32 %v950, %v950
  %v1101 = vmul.f32 %v951, %v951
  %v1102 = vmul.f32 %v952, %v952
  %v1103 = vmul.f32 %v953, %v953
  %v1104 = vmul.f32 %v954, %v954
  %v1105 = vmul.f32 %v955, %v955
  %v1106 = vmul.f32 %v956, %v956
  %v1107 = vmul.f32 %v957, %v957
  %v1108 = vmul.f32 %v958, %v958
  %v1109 = vmul.f32 %v959, %v959
  %v1110 = vmul.f32 %v960, %v960
  %v1111 = vmul.f32 %v961, %v961
  %v1112 = vmul.f32 %v962, %v962
  %v1113 = vmul.f32 %v963, %v963
  %v1114 = vmul.f32 %v964, %v964
  %v1115 = vmul.f32 %v965, %v965
  %v1116 = vmul.f32 %v966, %v966
  %v1117 = vmul.f32 %v967, %v967
  %v1118 = vmul.f32 %v968, %v968
  %v1119 = vmul.f32 %v969, %v969
  %v1120 = vmul.f32 %v970, %v970
  %v1121 = vmul.f32 %v971, %v971
  %v1122 = vmul.f32 %v972, %v972
  %v1123 = vmul.f32 %v973, %v973
  %v1124 = vmul.f32 %v974, %v974
  %v1125 = vmul.f32 %v975, %v975
  %v1126 = vmul.f32 %v976, %v976
  %v1127 = vmul.f32 %v977, %v977
  %v1128 = vmul.f32 %v978, %v978
  %v1129 = vmul.f32 %v979, %v979
  %v1130 = vmul.f32 %v980, %v980
  %v1131 = vmul.f32 %v981, %v981
  %v1132 = vmul.f32 %v982, %v982
  %v1133 = vmul.f32 %v983, %v983
  %v1134 = vmul.f32 %v984, %v984
  %v1135 = vmul.f32 %v985, %v985
  %v1136 = vmul.f32 %v986, %v986
  %v1137 = vmul.f32 %v987, %v987
  %v1138 = vmul.f32 %v988, %v988
  %v1139 = vmul.f32 %v989, %v989
  %v1140 = vmul.f32 %v990, %v990
  %v1141 = vmul.f32 %v991, %v991
  %v1142 = vmul.f32 %v992, %v992
  %v1143 = vmul.f32 %v993, %v993
  %v1144 = vmul.f32 %v994, %v994
  %v1145 = vmul.f32 %v995, %v995
  %v1146 = vmul.f32 %v996, %v996
  %v1147 = vmul.f32 %v997, %v997
  %v1148 = vmul.f32 %v998, %v998
  %v1149 = vmul.f32 %v999, %v999
  %v1150 = vmul.f32 %v1000, %v1000
  %v1151 = vmul.f32 %v1001, %v1001
  %v1152 = vmul.f32 %v1002, %v1002
  %v1153 = vmul.f32 %v1003, %v1003
  %v1154 = vmul.f32 %v1004, %v1004
  %v1155 = vmul.f32 %v1005, %v1005
  %v1156 = vmul.f32 %v1006, %v1006
  %v1157 = vmul.f32 %v1007, %v1007
  %v1158 = vmul.f32 %v1008, %v1008
  %v1159 = vmul.f32 %v1009, %v1009
  %v1160 = vmul.f32 %v1010, %v1010
  %v1161 = vmul.f32 %v1011, %v1011
  %v1162 = vmul.f32 %v1012, %v1012
  %v1163 = vmul.f32 %v1013, %v1013
  %v1164 = vmul.f32 %v1014, %v1014
  %v1165 = vmul.f32 %v1015, %v1015
  %v1166 = vmul.f32 %v1016, %v1016
  %v1167 = vmul.f32 %v1017, %v1017
  %v1168 = vmul.f32 %v1018, %v1018
  %v1169 = vmul.f32 %v1019, %v1019
  %v1170 = vmul.f32 %v1020, %v1020
  %v1171 = vmul.f32 %v1021, %v1021
  %v1172 = vmul.f32 %v1022, %v1022
  %v1173 = vmul.f32 %v1023, %v1023
  %v1174 = vmul.f32 %v1024, %v1024
  %v1175 = vmul.f32 %v1025, %v1025
  %v1176 = vmul.f32 %v1026, %v1026
  %v1177 = vmul.f32 %v1027, %v1027
  %v1178 = vmul.f32 %v1028, %v1028
  %v1179 = vmul.f32 %v1029, %v1029
  %v1180 = vmul.f32 %v1030, %v1030
  %v1181 = vmul.f32 %v1031, %v1031
  %v1182 = vmul.f32 %v1032, %v1032
  %v1183 = vmul.f32 %v1033, %v1033
  %v1184 = vmul.f32 %v1034, %v1034
  %v1185 = vmul.f32 %v1035, %v1035
  %v1186 = vmul.f32 %v1036, %v1036
  %v1187 = vmul.f32 %v1037, %v1037
  %v1188 = vmul.f32 %v1038, %v1038
  %v1189 = vmul.f32 %v1039, %v1039
  %v1190 = vmul.f32 %v1040, %v1040
  %v1191 = vmul.f32 %v1041, %v1041
  %v1192 = vmul.f32 %v1042, %v1042
  %v1193 = vmul.f32 %v1043, %v1043
  %v1194 = vmul.f32 %v1044, %v1044
  %v1195 = vmul.f32 %v1045, %v1045
  %v1196 = vmul.f32 %v1046, %v1046
  %v1197 = vmul.f32 %v1047, %v1047
  %v1198 = vmul.f32 %v1048, %v1048
  %v1199 = vmul.f32 %v1049, %v1049
  %v1200 = vmul.f32 %v1050, %v1050
  %v1201 = vmul.f32 %v1051, %v1051
  %v1202 = vmul.f32 %v1052, %v1052
  %v1203 = vmul.f32 %v1053, %v1053
  %v1204 = vmul.f32 %v1054, %v1054
  %v1205 = vmul.f32 %v1055, %v1055
  %v1206 = vmul.f32 %v1056, %v1056
  %v1207 = vmul.f32 %v1057, %v1057
  %v1208 = vmul.f32 %v1058, %v1058
  %v1209 = vmul.f32 %v1059, %v1059
  %v1210 = vmul.f32 %v1060, %v1060
  %v1211 = vmul.f32 %v1061, %v1061
  %v1212 = vmul.f32 %v1062, %v1062
  %v1213 = vmul.f32 %v1063, %v1063
  %v1214 = vmul.f32 %v1064, %v1064
  %v1215 = vmul.f32 %v1065, %v1065
  %v1216 = vmul.f32 %v1066, %v1066
  %v1217 = vmul.f32 %v1067, %v1067
  %v1218 = vmul.f32 %v1068, %v1068
  %v1219 = vmul.f32 %v1069, %v1069
  %v1220 = vmul.f32 %v1070, %v1070
  %v1221 = vmul.f32 %v1071, %v1071
  %v1222 = vmul.f32 %v1072, %v1072
  %v1223 = vmul.f32 %v1073, %v1073
  %v1224 = vmul.f32 %v1074, %v1074
  %v1225 = vmul.f32 %v1075, %v1075
  %v1226 = vmul.f32 %v1076, %v1076
  %v1227 = vmul.f32 %v1077, %v1077
  %v1228 = vmul.f32 %v1078, %v1078
  %v1229 = vadd.f32 %v525, %v1079
  %v1230 = vadd.f32 %v526, %v1080
  %v1231 = vadd.f32 %v527, %v1081
  %v1232 = vadd.f32 %v528, %v1082
  %v1233 = vadd.f32 %v529, %v1083
  %v1234 = vadd.f32 %v530, %v1084
  %v1235 = vadd.f32 %v531, %v1085
  %v1236 = vadd.f32 %v532, %v1086
  %v1237 = vadd.f32 %v533, %v1087
  %v1238 = vadd.f32 %v534, %v1088
  %v1239 = vadd.f32 %v535, %v1089
  %v1240 = vadd.f32 %v536, %v1090
  %v1241 = vadd.f32 %v537, %v1091
  %v1242 = vadd.f32 %v538, %v1092
  %v1243 = vadd.f32 %v539, %v1093
  %v1244 = vadd.f32 %v540, %v1094
  %v1245 = vadd.f32 %v541, %v1095
  %v1246 = vadd.f32 %v542, %v1096
  %v1247 = vadd.f32 %v543, %v1097
  %v1248 = vadd.f32 %v544, %v1098
  %v1249 = vadd.f32 %v545, %v1099
  %v1250 = vadd.f32 %v546, %v1100
  %v1251 = vadd.f32 %v547, %v1101
  %v1252 = vadd.f32 %v548, %v1102
  %v1253 = vadd.f32 %v549, %v1103
  %v1254 = vadd.f32 %v550, %v1104
  %v1255 = vadd.f32 %v551, %v1105
  %v1256 = vadd.f32 %v552, %v1106
  %v1257 = vadd.f32 %v553, %v1107
  %v1258 = vadd.f32 %v554, %v1108
  %v1259 = vadd.f32 %v555, %v1109
  %v1260 = vadd.f32 %v556, %v1110
  %v1261 = vadd.f32 %v557, %v1111
  %v1262 = vadd.f32 %v558, %v1112
  %v1263 = vadd.f32 %v559, %v1113
  %v1264 = vadd.f32 %v560, %v1114
  %v1265 = vadd.f32 %v561, %v1115
  %v1266 = vadd.f32 %v562, %v1116
  %v1267 = vadd.f32 %v563, %v1117
  %v1268 = vadd.f32 %v564, %v1118
  %v1269 = vadd.f32 %v565, %v1119
  %v1270 = vadd.f32 %v566, %v1120
  %v1271 = vadd.f32 %v567, %v1121
  %v1272 = vadd.f32 %v568, %v1122
  %v1273 = vadd.f32 %v569, %v1123
  %v1274 = vadd.f32 %v570, %v1124
  %v1275 = vadd.f32 %v571, %v1125
  %v1276 = vadd.f32 %v572, %v1126
  %v1277 = vadd.f32 %v573, %v1127
  %v1278 = vadd.f32 %v574, %v1128
  %v1279 = vadd.f32 %v575, %v1129
  %v1280 = vadd.f32 %v576, %v1130
  %v1281 = vadd.f32 %v577, %v1131
  %v1282 = vadd.f32 %v578, %v1132
  %v1283 = vadd.f32 %v579, %v1133
  %v1284 = vadd.f32 %v580, %v1134
  %v1285 = vadd.f32 %v581, %v1135
  %v1286 = vadd.f32 %v582, %v1136
  %v1287 = vadd.f32 %v583, %v1137
  %v1288 = vadd.f32 %v584, %v1138
  %v1289 = vadd.f32 %v585, %v1139
  %v1290 = vadd.f32 %v586, %v1140
  %v1291 = vadd.f32 %v587, %v1141
  %v1292 = vadd.f32 %v588, %v1142
  %v1293 = vadd.f32 %v589, %v1143
  %v1294 = vadd.f32 %v590, %v1144
  %v1295 = vadd.f32 %v591, %v1145
  %v1296 = vadd.f32 %v592, %v1146
  %v1297 = vadd.f32 %v593, %v1147
  %v1298 = vadd.f32 %v594, %v1148
  %v1299 = vadd.f32 %v595, %v1149
  %v1300 = vadd.f32 %v596, %v1150
  %v1301 = vadd.f32 %v597, %v1151
  %v1302 = vadd.f32 %v598, %v1152
  %v1303 = vadd.f32 %v599, %v1153
  %v1304 = vadd.f32 %v600, %v1154
  %v1305 = vadd.f32 %v601, %v1155
  %v1306 = vadd.f32 %v602, %v1156
  %v1307 = vadd.f32 %v603, %v1157
  %v1308 = vadd.f32 %v604, %v1158
  %v1309 = vadd.f32 %v605, %v1159
  %v1310 = vadd.f32 %v606, %v1160
  %v1311 = vadd.f32 %v607, %v1161
  %v1312 = vadd.f32 %v608, %v1162
  %v1313 = vadd.f32 %v609, %v1163
  %v1314 = vadd.f32 %v610, %v1164
  %v1315 = vadd.f32 %v611, %v1165
  %v1316 = vadd.f32 %v612, %v1166
  %v1317 = vadd.f32 %v613, %v1167
  %v1318 = vadd.f32 %v614, %v1168
  %v1319 = vadd.f32 %v615, %v1169
  %v1320 = vadd.f32 %v616, %v1170
  %v1321 = vadd.f32 %v617, %v1171
  %v1322 = vadd.f32 %v618, %v1172
  %v1323 = vadd.f32 %v619, %v1173
  %v1324 = vadd.f32 %v620, %v1174
  %v1325 = vadd.f32 %v621, %v1175
  %v1326 = vadd.f32 %v622, %v1176
  %v1327 = vadd.f32 %v623, %v1177
  %v1328 = vadd.f32 %v624, %v1178
  %v1329 = vadd.f32 %v625, %v1179
  %v1330 = vadd.f32 %v626, %v1180
  %v1331 = vadd.f32 %v627, %v1181
  %v1332 = vadd.f32 %v628, %v1182
  %v1333 = vadd.f32 %v629, %v1183
  %v1334 = vadd.f32 %v630, %v1184
  %v1335 = vadd.f32 %v631, %v1185
  %v1336 = vadd.f32 %v632, %v1186
  %v1337 = vadd.f32 %v633, %v1187
  %v1338 = vadd.f32 %v634, %v1188
  %v1339 = vadd.f32 %v635, %v1189
  %v1340 = vadd.f32 %v636, %v1190
  %v1341 = vadd.f32 %v637, %v1191
  %v1342 = vadd.f32 %v638, %v1192
  %v1343 = vadd.f32 %v639, %v1193
  %v1344 = vadd.f32 %v640, %v1194
  %v1345 = vadd.f32 %v641, %v1195
  %v1346 = vadd.f32 %v642, %v1196
  %v1347 = vadd.f32 %v643, %v1197
  %v1348 = vadd.f32 %v644, %v1198
  %v1349 = vadd.f32 %v645, %v1199
  %v1350 = vadd.f32 %v646, %v1200
  %v1351 = vadd.f32 %v647, %v1201
  %v1352 = vadd.f32 %v648, %v1202
  %v1353 = vadd.f32 %v649, %v1203
  %v1354 = vadd.f32 %v650, %v1204
  %v1355 = vadd.f32 %v651, %v1205
  %v1356 = vadd.f32 %v652, %v1206
  %v1357 = vadd.f32 %v653, %v1207
  %v1358 = vadd.f32 %v654, %v1208
  %v1359 = vadd.f32 %v655, %v1209
  %v1360 = vadd.f32 %v656, %v1210
  %v1361 = vadd.f32 %v657, %v1211
  %v1362 = vadd.f32 %v658, %v1212
  %v1363 = vadd.f32 %v659, %v1213
  %v1364 = vadd.f32 %v660, %v1214
  %v1365 = vadd.f32 %v661, %v1215
  %v1366 = vadd.f32 %v662, %v1216
  %v1367 = vadd.f32 %v663, %v1217
  %v1368 = vadd.f32 %v664, %v1218
  %v1369 = vadd.f32 %v665, %v1219
  %v1370 = vadd.f32 %v666, %v1220
  %v1371 = vadd.f32 %v667, %v1221
  %v1372 = vadd.f32 %v668, %v1222
  %v1373 = vadd.f32 %v669, %v1223
  %v1374 = vadd.f32 %v670, %v1224
  %v1375 = vadd.f32 %v671, %v1225
  %v1376 = vadd.f32 %v672, %v1226
  %v1377 = vadd.f32 %v673, %v1227
  %v1378 = vadd.f32 %v674, %v1228
  %1379 = vset.pattern.permute.xlu0 2
  %1380 = vperm.xlu0 %1379, %v13
  %v1381 = vpop.permute.xlu0 %1380
  %1383 = vset.pattern.permute.xlu0 2
  %1384 = vperm.xlu0 %1383, %v14
  %v1385 = vpop.permute.xlu0 %1384
  %1387 = vset.pattern.permute.xlu0 2
  %1388 = vperm.xlu0 %1387, %v15
  %v1389 = vpop.permute.xlu0 %1388
  %1391 = vset.pattern.permute.xlu0 2
  %1392 = vperm.xlu0 %1391, %v16
  %v1393 = vpop.permute.xlu0 %1392
  %1395 = vset.pattern.permute.xlu0 2
  %1396 = vperm.xlu0 %1395, %v17
  %v1397 = vpop.permute.xlu0 %1396
  %1399 = vset.pattern.permute.xlu0 2
  %1400 = vperm.xlu0 %1399, %v18
  %v1401 = vpop.permute.xlu0 %1400
  %1403 = vset.pattern.permute.xlu0 2
  %1404 = vperm.xlu0 %1403, %v19
  %v1405 = vpop.permute.xlu0 %1404
  %1407 = vset.pattern.permute.xlu0 2
  %1408 = vperm.xlu0 %1407, %v20
  %v1409 = vpop.permute.xlu0 %1408
  %1411 = vset.pattern.permute.xlu0 2
  %1412 = vperm.xlu0 %1411, %v21
  %v1413 = vpop.permute.xlu0 %1412
  %1415 = vset.pattern.permute.xlu0 2
  %1416 = vperm.xlu0 %1415, %v22
  %v1417 = vpop.permute.xlu0 %1416
  %1419 = vset.pattern.permute.xlu0 2
  %1420 = vperm.xlu0 %1419, %v23
  %v1421 = vpop.permute.xlu0 %1420
  %1423 = vset.pattern.permute.xlu0 2
  %1424 = vperm.xlu0 %1423, %v24
  %v1425 = vpop.permute.xlu0 %1424
  %1427 = vset.pattern.permute.xlu0 2
  %1428 = vperm.xlu0 %1427, %v25
  %v1429 = vpop.permute.xlu0 %1428
  %1431 = vset.pattern.permute.xlu0 2
  %1432 = vperm.xlu0 %1431, %v26
  %v1433 = vpop.permute.xlu0 %1432
  %1435 = vset.pattern.permute.xlu0 2
  %1436 = vperm.xlu0 %1435, %v27
  %v1437 = vpop.permute.xlu0 %1436
  %1439 = vset.pattern.permute.xlu0 2
  %1440 = vperm.xlu0 %1439, %v28
  %v1441 = vpop.permute.xlu0 %1440
  %1443 = vset.pattern.permute.xlu0 2
  %1444 = vperm.xlu0 %1443, %v29
  %v1445 = vpop.permute.xlu0 %1444
  %1447 = vset.pattern.permute.xlu0 2
  %1448 = vperm.xlu0 %1447, %v30
  %v1449 = vpop.permute.xlu0 %1448
  %1451 = vset.pattern.permute.xlu0 2
  %1452 = vperm.xlu0 %1451, %v31
  %v1453 = vpop.permute.xlu0 %1452
  %1455 = vset.pattern.permute.xlu0 2
  %1456 = vperm.xlu0 %1455, %v32
  %v1457 = vpop.permute.xlu0 %1456
  %1459 = vset.pattern.permute.xlu0 2
  %1460 = vperm.xlu0 %1459, %v33
  %v1461 = vpop.permute.xlu0 %1460
  %1463 = vset.pattern.permute.xlu0 2
  %1464 = vperm.xlu0 %1463, %v34
  %v1465 = vpop.permute.xlu0 %1464
  %1467 = vset.pattern.permute.xlu0 2
  %1468 = vperm.xlu0 %1467, %v35
  %v1469 = vpop.permute.xlu0 %1468
  %1471 = vset.pattern.permute.xlu0 2
  %1472 = vperm.xlu0 %1471, %v36
  %v1473 = vpop.permute.xlu0 %1472
  %1475 = vset.pattern.permute.xlu0 2
  %1476 = vperm.xlu0 %1475, %v37
  %v1477 = vpop.permute.xlu0 %1476
  %1479 = vset.pattern.permute.xlu0 2
  %1480 = vperm.xlu0 %1479, %v38
  %v1481 = vpop.permute.xlu0 %1480
  %1483 = vset.pattern.permute.xlu0 2
  %1484 = vperm.xlu0 %1483, %v39
  %v1485 = vpop.permute.xlu0 %1484
  %1487 = vset.pattern.permute.xlu0 2
  %1488 = vperm.xlu0 %1487, %v40
  %v1489 = vpop.permute.xlu0 %1488
  %1491 = vset.pattern.permute.xlu0 2
  %1492 = vperm.xlu0 %1491, %v41
  %v1493 = vpop.permute.xlu0 %1492
  %1495 = vset.pattern.permute.xlu0 2
  %1496 = vperm.xlu0 %1495, %v42
  %v1497 = vpop.permute.xlu0 %1496
  %1499 = vset.pattern.permute.xlu0 2
  %1500 = vperm.xlu0 %1499, %v43
  %v1501 = vpop.permute.xlu0 %1500
  %1503 = vset.pattern.permute.xlu0 2
  %1504 = vperm.xlu0 %1503, %v44
  %v1505 = vpop.permute.xlu0 %1504
  %1507 = vset.pattern.permute.xlu0 2
  %1508 = vperm.xlu0 %1507, %v45
  %v1509 = vpop.permute.xlu0 %1508
  %1511 = vset.pattern.permute.xlu0 2
  %1512 = vperm.xlu0 %1511, %v46
  %v1513 = vpop.permute.xlu0 %1512
  %1515 = vset.pattern.permute.xlu0 2
  %1516 = vperm.xlu0 %1515, %v47
  %v1517 = vpop.permute.xlu0 %1516
  %1519 = vset.pattern.permute.xlu0 2
  %1520 = vperm.xlu0 %1519, %v48
  %v1521 = vpop.permute.xlu0 %1520
  %1523 = vset.pattern.permute.xlu0 2
  %1524 = vperm.xlu0 %1523, %v49
  %v1525 = vpop.permute.xlu0 %1524
  %1527 = vset.pattern.permute.xlu0 2
  %1528 = vperm.xlu0 %1527, %v50
  %v1529 = vpop.permute.xlu0 %1528
  %1531 = vset.pattern.permute.xlu0 2
  %1532 = vperm.xlu0 %1531, %v51
  %v1533 = vpop.permute.xlu0 %1532
  %1535 = vset.pattern.permute.xlu0 2
  %1536 = vperm.xlu0 %1535, %v52
  %v1537 = vpop.permute.xlu0 %1536
  %1539 = vset.pattern.permute.xlu0 2
  %1540 = vperm.xlu0 %1539, %v53
  %v1541 = vpop.permute.xlu0 %1540
  %1543 = vset.pattern.permute.xlu0 2
  %1544 = vperm.xlu0 %1543, %v54
  %v1545 = vpop.permute.xlu0 %1544
  %1547 = vset.pattern.permute.xlu0 2
  %1548 = vperm.xlu0 %1547, %v55
  %v1549 = vpop.permute.xlu0 %1548
  %1551 = vset.pattern.permute.xlu0 2
  %1552 = vperm.xlu0 %1551, %v56
  %v1553 = vpop.permute.xlu0 %1552
  %1555 = vset.pattern.permute.xlu0 2
  %1556 = vperm.xlu0 %1555, %v57
  %v1557 = vpop.permute.xlu0 %1556
  %1559 = vset.pattern.permute.xlu0 2
  %1560 = vperm.xlu0 %1559, %v58
  %v1561 = vpop.permute.xlu0 %1560
  %1563 = vset.pattern.permute.xlu0 2
  %1564 = vperm.xlu0 %1563, %v59
  %v1565 = vpop.permute.xlu0 %1564
  %1567 = vset.pattern.permute.xlu0 2
  %1568 = vperm.xlu0 %1567, %v60
  %v1569 = vpop.permute.xlu0 %1568
  %1571 = vset.pattern.permute.xlu0 2
  %1572 = vperm.xlu0 %1571, %v61
  %v1573 = vpop.permute.xlu0 %1572
  %1575 = vset.pattern.permute.xlu0 2
  %1576 = vperm.xlu0 %1575, %v62
  %v1577 = vpop.permute.xlu0 %1576
  %v1579 = vlaneseq
  %v1580 = vshrl.u32 %v1579, 7
  %v1581 = vsub.s32 2, %v1580
  %v1582 = vrot.slane %v63, %v1581
  %v1583 = vlaneseq
  %v1584 = vshrl.u32 %v1583, 7
  %v1585 = vsub.s32 6, %v1584
  %v1586 = vrot.slane %v63, %v1585
  %v1587 = vlaneseq
  %v1588 = vshrl.u32 %v1587, 7
  %v1589 = vsub.s32 2, %v1588
  %v1590 = vrot.slane %v64, %v1589
  %v1591 = vlaneseq
  %v1592 = vshrl.u32 %v1591, 7
  %v1593 = vsub.s32 2, %v1592
  %v1594 = vrot.slane %v65, %v1593
  %v1595 = vlaneseq
  %v1596 = vshrl.u32 %v1595, 7
  %v1597 = vsub.s32 6, %v1596
  %v1598 = vrot.slane %v65, %v1597
  %v1599 = vlaneseq
  %v1600 = vshrl.u32 %v1599, 7
  %v1601 = vsub.s32 2, %v1600
  %v1602 = vrot.slane %v66, %v1601
  %v1609 = vlaneseq
  %v1610 = vshrl.u32 %v1609, 7
  %v1611 = vsub.s32 2, %v1610
  %v1612 = vrot.slane %v1582, %v1611
  %v1613 = vlaneseq
  %v1614 = vshrl.u32 %v1613, 7
  %v1615 = vsub.s32 2, %v1614
  %v1616 = vrot.slane %v1586, %v1615
  %v1617 = vlaneseq
  %v1618 = vshrl.u32 %v1617, 7
  %v1619 = vsub.s32 2, %v1618
  %v1620 = vrot.slane %v1590, %v1619
  %v1621 = vlaneseq
  %v1622 = vshrl.u32 %v1621, 7
  %v1623 = vsub.s32 2, %v1622
  %v1624 = vrot.slane %v1594, %v1623
  %v1625 = vlaneseq
  %v1626 = vshrl.u32 %v1625, 7
  %v1627 = vsub.s32 2, %v1626
  %v1628 = vrot.slane %v1598, %v1627
  %v1629 = vlaneseq
  %v1630 = vshrl.u32 %v1629, 7
  %v1631 = vsub.s32 2, %v1630
  %v1632 = vrot.slane %v1602, %v1631
  %v1633 = vsub.f32 %v1381, %v1612
  %v1634 = vsub.f32 %v1381, %v1616
  %v1635 = vsub.f32 %v1381, %v1620
  %v1636 = vsub.f32 %v1385, %v1612
  %v1637 = vsub.f32 %v1385, %v1616
  %v1638 = vsub.f32 %v1385, %v1620
  %v1639 = vsub.f32 %v1389, %v1612
  %v1640 = vsub.f32 %v1389, %v1616
  %v1641 = vsub.f32 %v1389, %v1620
  %v1642 = vsub.f32 %v1393, %v1612
  %v1643 = vsub.f32 %v1393, %v1616
  %v1644 = vsub.f32 %v1393, %v1620
  %v1645 = vsub.f32 %v1397, %v1612
  %v1646 = vsub.f32 %v1397, %v1616
  %v1647 = vsub.f32 %v1397, %v1620
  %v1648 = vsub.f32 %v1401, %v1612
  %v1649 = vsub.f32 %v1401, %v1616
  %v1650 = vsub.f32 %v1401, %v1620
  %v1651 = vsub.f32 %v1405, %v1612
  %v1652 = vsub.f32 %v1405, %v1616
  %v1653 = vsub.f32 %v1405, %v1620
  %v1654 = vsub.f32 %v1409, %v1612
  %v1655 = vsub.f32 %v1409, %v1616
  %v1656 = vsub.f32 %v1409, %v1620
  %v1657 = vsub.f32 %v1413, %v1612
  %v1658 = vsub.f32 %v1413, %v1616
  %v1659 = vsub.f32 %v1413, %v1620
  %v1660 = vsub.f32 %v1417, %v1612
  %v1661 = vsub.f32 %v1417, %v1616
  %v1662 = vsub.f32 %v1417, %v1620
  %v1663 = vsub.f32 %v1421, %v1612
  %v1664 = vsub.f32 %v1421, %v1616
  %v1665 = vsub.f32 %v1421, %v1620
  %v1666 = vsub.f32 %v1425, %v1612
  %v1667 = vsub.f32 %v1425, %v1616
  %v1668 = vsub.f32 %v1425, %v1620
  %v1669 = vsub.f32 %v1429, %v1612
  %v1670 = vsub.f32 %v1429, %v1616
  %v1671 = vsub.f32 %v1429, %v1620
  %v1672 = vsub.f32 %v1433, %v1612
  %v1673 = vsub.f32 %v1433, %v1616
  %v1674 = vsub.f32 %v1433, %v1620
  %v1675 = vsub.f32 %v1437, %v1612
  %v1676 = vsub.f32 %v1437, %v1616
  %v1677 = vsub.f32 %v1437, %v1620
  %v1678 = vsub.f32 %v1441, %v1612
  %v1679 = vsub.f32 %v1441, %v1616
  %v1680 = vsub.f32 %v1441, %v1620
  %v1681 = vsub.f32 %v1445, %v1612
  %v1682 = vsub.f32 %v1445, %v1616
  %v1683 = vsub.f32 %v1445, %v1620
  %v1684 = vsub.f32 %v1449, %v1612
  %v1685 = vsub.f32 %v1449, %v1616
  %v1686 = vsub.f32 %v1449, %v1620
  %v1687 = vsub.f32 %v1453, %v1612
  %v1688 = vsub.f32 %v1453, %v1616
  %v1689 = vsub.f32 %v1453, %v1620
  %v1690 = vsub.f32 %v1457, %v1612
  %v1691 = vsub.f32 %v1457, %v1616
  %v1692 = vsub.f32 %v1457, %v1620
  %v1693 = vsub.f32 %v1461, %v1612
  %v1694 = vsub.f32 %v1461, %v1616
  %v1695 = vsub.f32 %v1461, %v1620
  %v1696 = vsub.f32 %v1465, %v1612
  %v1697 = vsub.f32 %v1465, %v1616
  %v1698 = vsub.f32 %v1465, %v1620
  %v1699 = vsub.f32 %v1469, %v1612
  %v1700 = vsub.f32 %v1469, %v1616
  %v1701 = vsub.f32 %v1469, %v1620
  %v1702 = vsub.f32 %v1473, %v1612
  %v1703 = vsub.f32 %v1473, %v1616
  %v1704 = vsub.f32 %v1473, %v1620
  %v1705 = vsub.f32 %v1477, %v1612
  %v1706 = vsub.f32 %v1477, %v1616
  %v1707 = vsub.f32 %v1477, %v1620
  %v1708 = vsub.f32 %v1481, %v1624
  %v1709 = vsub.f32 %v1481, %v1628
  %v1710 = vsub.f32 %v1481, %v1632
  %v1711 = vsub.f32 %v1485, %v1624
  %v1712 = vsub.f32 %v1485, %v1628
  %v1713 = vsub.f32 %v1485, %v1632
  %v1714 = vsub.f32 %v1489, %v1624
  %v1715 = vsub.f32 %v1489, %v1628
  %v1716 = vsub.f32 %v1489, %v1632
  %v1717 = vsub.f32 %v1493, %v1624
  %v1718 = vsub.f32 %v1493, %v1628
  %v1719 = vsub.f32 %v1493, %v1632
  %v1720 = vsub.f32 %v1497, %v1624
  %v1721 = vsub.f32 %v1497, %v1628
  %v1722 = vsub.f32 %v1497, %v1632
  %v1723 = vsub.f32 %v1501, %v1624
  %v1724 = vsub.f32 %v1501, %v1628
  %v1725 = vsub.f32 %v1501, %v1632
  %v1726 = vsub.f32 %v1505, %v1624
  %v1727 = vsub.f32 %v1505, %v1628
  %v1728 = vsub.f32 %v1505, %v1632
  %v1729 = vsub.f32 %v1509, %v1624
  %v1730 = vsub.f32 %v1509, %v1628
  %v1731 = vsub.f32 %v1509, %v1632
  %v1732 = vsub.f32 %v1513, %v1624
  %v1733 = vsub.f32 %v1513, %v1628
  %v1734 = vsub.f32 %v1513, %v1632
  %v1735 = vsub.f32 %v1517, %v1624
  %v1736 = vsub.f32 %v1517, %v1628
  %v1737 = vsub.f32 %v1517, %v1632
  %v1738 = vsub.f32 %v1521, %v1624
  %v1739 = vsub.f32 %v1521, %v1628
  %v1740 = vsub.f32 %v1521, %v1632
  %v1741 = vsub.f32 %v1525, %v1624
  %v1742 = vsub.f32 %v1525, %v1628
  %v1743 = vsub.f32 %v1525, %v1632
  %v1744 = vsub.f32 %v1529, %v1624
  %v1745 = vsub.f32 %v1529, %v1628
  %v1746 = vsub.f32 %v1529, %v1632
  %v1747 = vsub.f32 %v1533, %v1624
  %v1748 = vsub.f32 %v1533, %v1628
  %v1749 = vsub.f32 %v1533, %v1632
  %v1750 = vsub.f32 %v1537, %v1624
  %v1751 = vsub.f32 %v1537, %v1628
  %v1752 = vsub.f32 %v1537, %v1632
  %v1753 = vsub.f32 %v1541, %v1624
  %v1754 = vsub.f32 %v1541, %v1628
  %v1755 = vsub.f32 %v1541, %v1632
  %v1756 = vsub.f32 %v1545, %v1624
  %v1757 = vsub.f32 %v1545, %v1628
  %v1758 = vsub.f32 %v1545, %v1632
  %v1759 = vsub.f32 %v1549, %v1624
  %v1760 = vsub.f32 %v1549, %v1628
  %v1761 = vsub.f32 %v1549, %v1632
  %v1762 = vsub.f32 %v1553, %v1624
  %v1763 = vsub.f32 %v1553, %v1628
  %v1764 = vsub.f32 %v1553, %v1632
  %v1765 = vsub.f32 %v1557, %v1624
  %v1766 = vsub.f32 %v1557, %v1628
  %v1767 = vsub.f32 %v1557, %v1632
  %v1768 = vsub.f32 %v1561, %v1624
  %v1769 = vsub.f32 %v1561, %v1628
  %v1770 = vsub.f32 %v1561, %v1632
  %v1771 = vsub.f32 %v1565, %v1624
  %v1772 = vsub.f32 %v1565, %v1628
  %v1773 = vsub.f32 %v1565, %v1632
  %v1774 = vsub.f32 %v1569, %v1624
  %v1775 = vsub.f32 %v1569, %v1628
  %v1776 = vsub.f32 %v1569, %v1632
  %v1777 = vsub.f32 %v1573, %v1624
  %v1778 = vsub.f32 %v1573, %v1628
  %v1779 = vsub.f32 %v1573, %v1632
  %v1780 = vsub.f32 %v1577, %v1624
  %v1781 = vsub.f32 %v1577, %v1628
  %v1782 = vsub.f32 %v1577, %v1632
  %v1783 = vmul.f32 %v1633, %v1633
  %v1784 = vmul.f32 %v1634, %v1634
  %v1785 = vmul.f32 %v1635, %v1635
  %v1786 = vmul.f32 %v1636, %v1636
  %v1787 = vmul.f32 %v1637, %v1637
  %v1788 = vmul.f32 %v1638, %v1638
  %v1789 = vmul.f32 %v1639, %v1639
  %v1790 = vmul.f32 %v1640, %v1640
  %v1791 = vmul.f32 %v1641, %v1641
  %v1792 = vmul.f32 %v1642, %v1642
  %v1793 = vmul.f32 %v1643, %v1643
  %v1794 = vmul.f32 %v1644, %v1644
  %v1795 = vmul.f32 %v1645, %v1645
  %v1796 = vmul.f32 %v1646, %v1646
  %v1797 = vmul.f32 %v1647, %v1647
  %v1798 = vmul.f32 %v1648, %v1648
  %v1799 = vmul.f32 %v1649, %v1649
  %v1800 = vmul.f32 %v1650, %v1650
  %v1801 = vmul.f32 %v1651, %v1651
  %v1802 = vmul.f32 %v1652, %v1652
  %v1803 = vmul.f32 %v1653, %v1653
  %v1804 = vmul.f32 %v1654, %v1654
  %v1805 = vmul.f32 %v1655, %v1655
  %v1806 = vmul.f32 %v1656, %v1656
  %v1807 = vmul.f32 %v1657, %v1657
  %v1808 = vmul.f32 %v1658, %v1658
  %v1809 = vmul.f32 %v1659, %v1659
  %v1810 = vmul.f32 %v1660, %v1660
  %v1811 = vmul.f32 %v1661, %v1661
  %v1812 = vmul.f32 %v1662, %v1662
  %v1813 = vmul.f32 %v1663, %v1663
  %v1814 = vmul.f32 %v1664, %v1664
  %v1815 = vmul.f32 %v1665, %v1665
  %v1816 = vmul.f32 %v1666, %v1666
  %v1817 = vmul.f32 %v1667, %v1667
  %v1818 = vmul.f32 %v1668, %v1668
  %v1819 = vmul.f32 %v1669, %v1669
  %v1820 = vmul.f32 %v1670, %v1670
  %v1821 = vmul.f32 %v1671, %v1671
  %v1822 = vmul.f32 %v1672, %v1672
  %v1823 = vmul.f32 %v1673, %v1673
  %v1824 = vmul.f32 %v1674, %v1674
  %v1825 = vmul.f32 %v1675, %v1675
  %v1826 = vmul.f32 %v1676, %v1676
  %v1827 = vmul.f32 %v1677, %v1677
  %v1828 = vmul.f32 %v1678, %v1678
  %v1829 = vmul.f32 %v1679, %v1679
  %v1830 = vmul.f32 %v1680, %v1680
  %v1831 = vmul.f32 %v1681, %v1681
  %v1832 = vmul.f32 %v1682, %v1682
  %v1833 = vmul.f32 %v1683, %v1683
  %v1834 = vmul.f32 %v1684, %v1684
  %v1835 = vmul.f32 %v1685, %v1685
  %v1836 = vmul.f32 %v1686, %v1686
  %v1837 = vmul.f32 %v1687, %v1687
  %v1838 = vmul.f32 %v1688, %v1688
  %v1839 = vmul.f32 %v1689, %v1689
  %v1840 = vmul.f32 %v1690, %v1690
  %v1841 = vmul.f32 %v1691, %v1691
  %v1842 = vmul.f32 %v1692, %v1692
  %v1843 = vmul.f32 %v1693, %v1693
  %v1844 = vmul.f32 %v1694, %v1694
  %v1845 = vmul.f32 %v1695, %v1695
  %v1846 = vmul.f32 %v1696, %v1696
  %v1847 = vmul.f32 %v1697, %v1697
  %v1848 = vmul.f32 %v1698, %v1698
  %v1849 = vmul.f32 %v1699, %v1699
  %v1850 = vmul.f32 %v1700, %v1700
  %v1851 = vmul.f32 %v1701, %v1701
  %v1852 = vmul.f32 %v1702, %v1702
  %v1853 = vmul.f32 %v1703, %v1703
  %v1854 = vmul.f32 %v1704, %v1704
  %v1855 = vmul.f32 %v1705, %v1705
  %v1856 = vmul.f32 %v1706, %v1706
  %v1857 = vmul.f32 %v1707, %v1707
  %v1858 = vmul.f32 %v1708, %v1708
  %v1859 = vmul.f32 %v1709, %v1709
  %v1860 = vmul.f32 %v1710, %v1710
  %v1861 = vmul.f32 %v1711, %v1711
  %v1862 = vmul.f32 %v1712, %v1712
  %v1863 = vmul.f32 %v1713, %v1713
  %v1864 = vmul.f32 %v1714, %v1714
  %v1865 = vmul.f32 %v1715, %v1715
  %v1866 = vmul.f32 %v1716, %v1716
  %v1867 = vmul.f32 %v1717, %v1717
  %v1868 = vmul.f32 %v1718, %v1718
  %v1869 = vmul.f32 %v1719, %v1719
  %v1870 = vmul.f32 %v1720, %v1720
  %v1871 = vmul.f32 %v1721, %v1721
  %v1872 = vmul.f32 %v1722, %v1722
  %v1873 = vmul.f32 %v1723, %v1723
  %v1874 = vmul.f32 %v1724, %v1724
  %v1875 = vmul.f32 %v1725, %v1725
  %v1876 = vmul.f32 %v1726, %v1726
  %v1877 = vmul.f32 %v1727, %v1727
  %v1878 = vmul.f32 %v1728, %v1728
  %v1879 = vmul.f32 %v1729, %v1729
  %v1880 = vmul.f32 %v1730, %v1730
  %v1881 = vmul.f32 %v1731, %v1731
  %v1882 = vmul.f32 %v1732, %v1732
  %v1883 = vmul.f32 %v1733, %v1733
  %v1884 = vmul.f32 %v1734, %v1734
  %v1885 = vmul.f32 %v1735, %v1735
  %v1886 = vmul.f32 %v1736, %v1736
  %v1887 = vmul.f32 %v1737, %v1737
  %v1888 = vmul.f32 %v1738, %v1738
  %v1889 = vmul.f32 %v1739, %v1739
  %v1890 = vmul.f32 %v1740, %v1740
  %v1891 = vmul.f32 %v1741, %v1741
  %v1892 = vmul.f32 %v1742, %v1742
  %v1893 = vmul.f32 %v1743, %v1743
  %v1894 = vmul.f32 %v1744, %v1744
  %v1895 = vmul.f32 %v1745, %v1745
  %v1896 = vmul.f32 %v1746, %v1746
  %v1897 = vmul.f32 %v1747, %v1747
  %v1898 = vmul.f32 %v1748, %v1748
  %v1899 = vmul.f32 %v1749, %v1749
  %v1900 = vmul.f32 %v1750, %v1750
  %v1901 = vmul.f32 %v1751, %v1751
  %v1902 = vmul.f32 %v1752, %v1752
  %v1903 = vmul.f32 %v1753, %v1753
  %v1904 = vmul.f32 %v1754, %v1754
  %v1905 = vmul.f32 %v1755, %v1755
  %v1906 = vmul.f32 %v1756, %v1756
  %v1907 = vmul.f32 %v1757, %v1757
  %v1908 = vmul.f32 %v1758, %v1758
  %v1909 = vmul.f32 %v1759, %v1759
  %v1910 = vmul.f32 %v1760, %v1760
  %v1911 = vmul.f32 %v1761, %v1761
  %v1912 = vmul.f32 %v1762, %v1762
  %v1913 = vmul.f32 %v1763, %v1763
  %v1914 = vmul.f32 %v1764, %v1764
  %v1915 = vmul.f32 %v1765, %v1765
  %v1916 = vmul.f32 %v1766, %v1766
  %v1917 = vmul.f32 %v1767, %v1767
  %v1918 = vmul.f32 %v1768, %v1768
  %v1919 = vmul.f32 %v1769, %v1769
  %v1920 = vmul.f32 %v1770, %v1770
  %v1921 = vmul.f32 %v1771, %v1771
  %v1922 = vmul.f32 %v1772, %v1772
  %v1923 = vmul.f32 %v1773, %v1773
  %v1924 = vmul.f32 %v1774, %v1774
  %v1925 = vmul.f32 %v1775, %v1775
  %v1926 = vmul.f32 %v1776, %v1776
  %v1927 = vmul.f32 %v1777, %v1777
  %v1928 = vmul.f32 %v1778, %v1778
  %v1929 = vmul.f32 %v1779, %v1779
  %v1930 = vmul.f32 %v1780, %v1780
  %v1931 = vmul.f32 %v1781, %v1781
  %v1932 = vmul.f32 %v1782, %v1782
  %v1933 = vadd.f32 %v1229, %v1783
  %v1934 = vadd.f32 %v1230, %v1784
  %v1935 = vadd.f32 %v1231, %v1785
  %v1936 = vadd.f32 %v1232, %v1786
  %v1937 = vadd.f32 %v1233, %v1787
  %v1938 = vadd.f32 %v1234, %v1788
  %v1939 = vadd.f32 %v1235, %v1789
  %v1940 = vadd.f32 %v1236, %v1790
  %v1941 = vadd.f32 %v1237, %v1791
  %v1942 = vadd.f32 %v1238, %v1792
  %v1943 = vadd.f32 %v1239, %v1793
  %v1944 = vadd.f32 %v1240, %v1794
  %v1945 = vadd.f32 %v1241, %v1795
  %v1946 = vadd.f32 %v1242, %v1796
  %v1947 = vadd.f32 %v1243, %v1797
  %v1948 = vadd.f32 %v1244, %v1798
  %v1949 = vadd.f32 %v1245, %v1799
  %v1950 = vadd.f32 %v1246, %v1800
  %v1951 = vadd.f32 %v1247, %v1801
  %v1952 = vadd.f32 %v1248, %v1802
  %v1953 = vadd.f32 %v1249, %v1803
  %v1954 = vadd.f32 %v1250, %v1804
  %v1955 = vadd.f32 %v1251, %v1805
  %v1956 = vadd.f32 %v1252, %v1806
  %v1957 = vadd.f32 %v1253, %v1807
  %v1958 = vadd.f32 %v1254, %v1808
  %v1959 = vadd.f32 %v1255, %v1809
  %v1960 = vadd.f32 %v1256, %v1810
  %v1961 = vadd.f32 %v1257, %v1811
  %v1962 = vadd.f32 %v1258, %v1812
  %v1963 = vadd.f32 %v1259, %v1813
  %v1964 = vadd.f32 %v1260, %v1814
  %v1965 = vadd.f32 %v1261, %v1815
  %v1966 = vadd.f32 %v1262, %v1816
  %v1967 = vadd.f32 %v1263, %v1817
  %v1968 = vadd.f32 %v1264, %v1818
  %v1969 = vadd.f32 %v1265, %v1819
  %v1970 = vadd.f32 %v1266, %v1820
  %v1971 = vadd.f32 %v1267, %v1821
  %v1972 = vadd.f32 %v1268, %v1822
  %v1973 = vadd.f32 %v1269, %v1823
  %v1974 = vadd.f32 %v1270, %v1824
  %v1975 = vadd.f32 %v1271, %v1825
  %v1976 = vadd.f32 %v1272, %v1826
  %v1977 = vadd.f32 %v1273, %v1827
  %v1978 = vadd.f32 %v1274, %v1828
  %v1979 = vadd.f32 %v1275, %v1829
  %v1980 = vadd.f32 %v1276, %v1830
  %v1981 = vadd.f32 %v1277, %v1831
  %v1982 = vadd.f32 %v1278, %v1832
  %v1983 = vadd.f32 %v1279, %v1833
  %v1984 = vadd.f32 %v1280, %v1834
  %v1985 = vadd.f32 %v1281, %v1835
  %v1986 = vadd.f32 %v1282, %v1836
  %v1987 = vadd.f32 %v1283, %v1837
  %v1988 = vadd.f32 %v1284, %v1838
  %v1989 = vadd.f32 %v1285, %v1839
  %v1990 = vadd.f32 %v1286, %v1840
  %v1991 = vadd.f32 %v1287, %v1841
  %v1992 = vadd.f32 %v1288, %v1842
  %v1993 = vadd.f32 %v1289, %v1843
  %v1994 = vadd.f32 %v1290, %v1844
  %v1995 = vadd.f32 %v1291, %v1845
  %v1996 = vadd.f32 %v1292, %v1846
  %v1997 = vadd.f32 %v1293, %v1847
  %v1998 = vadd.f32 %v1294, %v1848
  %v1999 = vadd.f32 %v1295, %v1849
  %v2000 = vadd.f32 %v1296, %v1850
  %v2001 = vadd.f32 %v1297, %v1851
  %v2002 = vadd.f32 %v1298, %v1852
  %v2003 = vadd.f32 %v1299, %v1853
  %v2004 = vadd.f32 %v1300, %v1854
  %v2005 = vadd.f32 %v1301, %v1855
  %v2006 = vadd.f32 %v1302, %v1856
  %v2007 = vadd.f32 %v1303, %v1857
  %v2008 = vadd.f32 %v1304, %v1858
  %v2009 = vadd.f32 %v1305, %v1859
  %v2010 = vadd.f32 %v1306, %v1860
  %v2011 = vadd.f32 %v1307, %v1861
  %v2012 = vadd.f32 %v1308, %v1862
  %v2013 = vadd.f32 %v1309, %v1863
  %v2014 = vadd.f32 %v1310, %v1864
  %v2015 = vadd.f32 %v1311, %v1865
  %v2016 = vadd.f32 %v1312, %v1866
  %v2017 = vadd.f32 %v1313, %v1867
  %v2018 = vadd.f32 %v1314, %v1868
  %v2019 = vadd.f32 %v1315, %v1869
  %v2020 = vadd.f32 %v1316, %v1870
  %v2021 = vadd.f32 %v1317, %v1871
  %v2022 = vadd.f32 %v1318, %v1872
  %v2023 = vadd.f32 %v1319, %v1873
  %v2024 = vadd.f32 %v1320, %v1874
  %v2025 = vadd.f32 %v1321, %v1875
  %v2026 = vadd.f32 %v1322, %v1876
  %v2027 = vadd.f32 %v1323, %v1877
  %v2028 = vadd.f32 %v1324, %v1878
  %v2029 = vadd.f32 %v1325, %v1879
  %v2030 = vadd.f32 %v1326, %v1880
  %v2031 = vadd.f32 %v1327, %v1881
  %v2032 = vadd.f32 %v1328, %v1882
  %v2033 = vadd.f32 %v1329, %v1883
  %v2034 = vadd.f32 %v1330, %v1884
  %v2035 = vadd.f32 %v1331, %v1885
  %v2036 = vadd.f32 %v1332, %v1886
  %v2037 = vadd.f32 %v1333, %v1887
  %v2038 = vadd.f32 %v1334, %v1888
  %v2039 = vadd.f32 %v1335, %v1889
  %v2040 = vadd.f32 %v1336, %v1890
  %v2041 = vadd.f32 %v1337, %v1891
  %v2042 = vadd.f32 %v1338, %v1892
  %v2043 = vadd.f32 %v1339, %v1893
  %v2044 = vadd.f32 %v1340, %v1894
  %v2045 = vadd.f32 %v1341, %v1895
  %v2046 = vadd.f32 %v1342, %v1896
  %v2047 = vadd.f32 %v1343, %v1897
  %v2048 = vadd.f32 %v1344, %v1898
  %v2049 = vadd.f32 %v1345, %v1899
  %v2050 = vadd.f32 %v1346, %v1900
  %v2051 = vadd.f32 %v1347, %v1901
  %v2052 = vadd.f32 %v1348, %v1902
  %v2053 = vadd.f32 %v1349, %v1903
  %v2054 = vadd.f32 %v1350, %v1904
  %v2055 = vadd.f32 %v1351, %v1905
  %v2056 = vadd.f32 %v1352, %v1906
  %v2057 = vadd.f32 %v1353, %v1907
  %v2058 = vadd.f32 %v1354, %v1908
  %v2059 = vadd.f32 %v1355, %v1909
  %v2060 = vadd.f32 %v1356, %v1910
  %v2061 = vadd.f32 %v1357, %v1911
  %v2062 = vadd.f32 %v1358, %v1912
  %v2063 = vadd.f32 %v1359, %v1913
  %v2064 = vadd.f32 %v1360, %v1914
  %v2065 = vadd.f32 %v1361, %v1915
  %v2066 = vadd.f32 %v1362, %v1916
  %v2067 = vadd.f32 %v1363, %v1917
  %v2068 = vadd.f32 %v1364, %v1918
  %v2069 = vadd.f32 %v1365, %v1919
  %v2070 = vadd.f32 %v1366, %v1920
  %v2071 = vadd.f32 %v1367, %v1921
  %v2072 = vadd.f32 %v1368, %v1922
  %v2073 = vadd.f32 %v1369, %v1923
  %v2074 = vadd.f32 %v1370, %v1924
  %v2075 = vadd.f32 %v1371, %v1925
  %v2076 = vadd.f32 %v1372, %v1926
  %v2077 = vadd.f32 %v1373, %v1927
  %v2078 = vadd.f32 %v1374, %v1928
  %v2079 = vadd.f32 %v1375, %v1929
  %v2080 = vadd.f32 %v1376, %v1930
  %v2081 = vadd.f32 %v1377, %v1931
  %v2082 = vadd.f32 %v1378, %v1932
  %v2083 = vmin.f32 %v1933, %v1934
  %v2084 = vmin.f32 %v2083, %v1935
  %2085 = vmin.xlane.f32.xlu0 %v2084
  %v2086 = vpop.xlane.xlu0 %2085
  %v2087 = vmin.f32 %v1936, %v1937
  %v2088 = vmin.f32 %v2087, %v1938
  %2089 = vmin.xlane.f32.xlu0 %v2088
  %v2090 = vpop.xlane.xlu0 %2089
  %v2091 = vmin.f32 %v1939, %v1940
  %v2092 = vmin.f32 %v2091, %v1941
  %2093 = vmin.xlane.f32.xlu0 %v2092
  %v2094 = vpop.xlane.xlu0 %2093
  %v2095 = vmin.f32 %v1942, %v1943
  %v2096 = vmin.f32 %v2095, %v1944
  %2097 = vmin.xlane.f32.xlu0 %v2096
  %v2098 = vpop.xlane.xlu0 %2097
  %v2099 = vmin.f32 %v1945, %v1946
  %v2100 = vmin.f32 %v2099, %v1947
  %2101 = vmin.xlane.f32.xlu0 %v2100
  %v2102 = vpop.xlane.xlu0 %2101
  %v2103 = vmin.f32 %v1948, %v1949
  %v2104 = vmin.f32 %v2103, %v1950
  %2105 = vmin.xlane.f32.xlu0 %v2104
  %v2106 = vpop.xlane.xlu0 %2105
  %v2107 = vmin.f32 %v1951, %v1952
  %v2108 = vmin.f32 %v2107, %v1953
  %2109 = vmin.xlane.f32.xlu0 %v2108
  %v2110 = vpop.xlane.xlu0 %2109
  %v2111 = vmin.f32 %v1954, %v1955
  %v2112 = vmin.f32 %v2111, %v1956
  %2113 = vmin.xlane.f32.xlu0 %v2112
  %v2114 = vpop.xlane.xlu0 %2113
  %v2115 = vmin.f32 %v1957, %v1958
  %v2116 = vmin.f32 %v2115, %v1959
  %2117 = vmin.xlane.f32.xlu0 %v2116
  %v2118 = vpop.xlane.xlu0 %2117
  %v2119 = vmin.f32 %v1960, %v1961
  %v2120 = vmin.f32 %v2119, %v1962
  %2121 = vmin.xlane.f32.xlu0 %v2120
  %v2122 = vpop.xlane.xlu0 %2121
  %v2123 = vmin.f32 %v1963, %v1964
  %v2124 = vmin.f32 %v2123, %v1965
  %2125 = vmin.xlane.f32.xlu0 %v2124
  %v2126 = vpop.xlane.xlu0 %2125
  %v2127 = vmin.f32 %v1966, %v1967
  %v2128 = vmin.f32 %v2127, %v1968
  %2129 = vmin.xlane.f32.xlu0 %v2128
  %v2130 = vpop.xlane.xlu0 %2129
  %v2131 = vmin.f32 %v1969, %v1970
  %v2132 = vmin.f32 %v2131, %v1971
  %2133 = vmin.xlane.f32.xlu0 %v2132
  %v2134 = vpop.xlane.xlu0 %2133
  %v2135 = vmin.f32 %v1972, %v1973
  %v2136 = vmin.f32 %v2135, %v1974
  %2137 = vmin.xlane.f32.xlu0 %v2136
  %v2138 = vpop.xlane.xlu0 %2137
  %v2139 = vmin.f32 %v1975, %v1976
  %v2140 = vmin.f32 %v2139, %v1977
  %2141 = vmin.xlane.f32.xlu0 %v2140
  %v2142 = vpop.xlane.xlu0 %2141
  %v2143 = vmin.f32 %v1978, %v1979
  %v2144 = vmin.f32 %v2143, %v1980
  %2145 = vmin.xlane.f32.xlu0 %v2144
  %v2146 = vpop.xlane.xlu0 %2145
  %v2147 = vmin.f32 %v1981, %v1982
  %v2148 = vmin.f32 %v2147, %v1983
  %2149 = vmin.xlane.f32.xlu0 %v2148
  %v2150 = vpop.xlane.xlu0 %2149
  %v2151 = vmin.f32 %v1984, %v1985
  %v2152 = vmin.f32 %v2151, %v1986
  %2153 = vmin.xlane.f32.xlu0 %v2152
  %v2154 = vpop.xlane.xlu0 %2153
  %v2155 = vmin.f32 %v1987, %v1988
  %v2156 = vmin.f32 %v2155, %v1989
  %2157 = vmin.xlane.f32.xlu0 %v2156
  %v2158 = vpop.xlane.xlu0 %2157
  %v2159 = vmin.f32 %v1990, %v1991
  %v2160 = vmin.f32 %v2159, %v1992
  %2161 = vmin.xlane.f32.xlu0 %v2160
  %v2162 = vpop.xlane.xlu0 %2161
  %v2163 = vmin.f32 %v1993, %v1994
  %v2164 = vmin.f32 %v2163, %v1995
  %2165 = vmin.xlane.f32.xlu0 %v2164
  %v2166 = vpop.xlane.xlu0 %2165
  %v2167 = vmin.f32 %v1996, %v1997
  %v2168 = vmin.f32 %v2167, %v1998
  %2169 = vmin.xlane.f32.xlu0 %v2168
  %v2170 = vpop.xlane.xlu0 %2169
  %v2171 = vmin.f32 %v1999, %v2000
  %v2172 = vmin.f32 %v2171, %v2001
  %2173 = vmin.xlane.f32.xlu0 %v2172
  %v2174 = vpop.xlane.xlu0 %2173
  %v2175 = vmin.f32 %v2002, %v2003
  %v2176 = vmin.f32 %v2175, %v2004
  %2177 = vmin.xlane.f32.xlu0 %v2176
  %v2178 = vpop.xlane.xlu0 %2177
  %v2179 = vmin.f32 %v2005, %v2006
  %v2180 = vmin.f32 %v2179, %v2007
  %2181 = vmin.xlane.f32.xlu0 %v2180
  %v2182 = vpop.xlane.xlu0 %2181
  %v2183 = vmin.f32 %v2008, %v2009
  %v2184 = vmin.f32 %v2183, %v2010
  %2185 = vmin.xlane.f32.xlu0 %v2184
  %v2186 = vpop.xlane.xlu0 %2185
  %v2187 = vmin.f32 %v2011, %v2012
  %v2188 = vmin.f32 %v2187, %v2013
  %2189 = vmin.xlane.f32.xlu0 %v2188
  %v2190 = vpop.xlane.xlu0 %2189
  %v2191 = vmin.f32 %v2014, %v2015
  %v2192 = vmin.f32 %v2191, %v2016
  %2193 = vmin.xlane.f32.xlu0 %v2192
  %v2194 = vpop.xlane.xlu0 %2193
  %v2195 = vmin.f32 %v2017, %v2018
  %v2196 = vmin.f32 %v2195, %v2019
  %2197 = vmin.xlane.f32.xlu0 %v2196
  %v2198 = vpop.xlane.xlu0 %2197
  %v2199 = vmin.f32 %v2020, %v2021
  %v2200 = vmin.f32 %v2199, %v2022
  %2201 = vmin.xlane.f32.xlu0 %v2200
  %v2202 = vpop.xlane.xlu0 %2201
  %v2203 = vmin.f32 %v2023, %v2024
  %v2204 = vmin.f32 %v2203, %v2025
  %2205 = vmin.xlane.f32.xlu0 %v2204
  %v2206 = vpop.xlane.xlu0 %2205
  %v2207 = vmin.f32 %v2026, %v2027
  %v2208 = vmin.f32 %v2207, %v2028
  %2209 = vmin.xlane.f32.xlu0 %v2208
  %v2210 = vpop.xlane.xlu0 %2209
  %v2211 = vmin.f32 %v2029, %v2030
  %v2212 = vmin.f32 %v2211, %v2031
  %2213 = vmin.xlane.f32.xlu0 %v2212
  %v2214 = vpop.xlane.xlu0 %2213
  %v2215 = vmin.f32 %v2032, %v2033
  %v2216 = vmin.f32 %v2215, %v2034
  %2217 = vmin.xlane.f32.xlu0 %v2216
  %v2218 = vpop.xlane.xlu0 %2217
  %v2219 = vmin.f32 %v2035, %v2036
  %v2220 = vmin.f32 %v2219, %v2037
  %2221 = vmin.xlane.f32.xlu0 %v2220
  %v2222 = vpop.xlane.xlu0 %2221
  %v2223 = vmin.f32 %v2038, %v2039
  %v2224 = vmin.f32 %v2223, %v2040
  %2225 = vmin.xlane.f32.xlu0 %v2224
  %v2226 = vpop.xlane.xlu0 %2225
  %v2227 = vmin.f32 %v2041, %v2042
  %v2228 = vmin.f32 %v2227, %v2043
  %2229 = vmin.xlane.f32.xlu0 %v2228
  %v2230 = vpop.xlane.xlu0 %2229
  %v2231 = vmin.f32 %v2044, %v2045
  %v2232 = vmin.f32 %v2231, %v2046
  %2233 = vmin.xlane.f32.xlu0 %v2232
  %v2234 = vpop.xlane.xlu0 %2233
  %v2235 = vmin.f32 %v2047, %v2048
  %v2236 = vmin.f32 %v2235, %v2049
  %2237 = vmin.xlane.f32.xlu0 %v2236
  %v2238 = vpop.xlane.xlu0 %2237
  %v2239 = vmin.f32 %v2050, %v2051
  %v2240 = vmin.f32 %v2239, %v2052
  %2241 = vmin.xlane.f32.xlu0 %v2240
  %v2242 = vpop.xlane.xlu0 %2241
  %v2243 = vmin.f32 %v2053, %v2054
  %v2244 = vmin.f32 %v2243, %v2055
  %2245 = vmin.xlane.f32.xlu0 %v2244
  %v2246 = vpop.xlane.xlu0 %2245
  %v2247 = vmin.f32 %v2056, %v2057
  %v2248 = vmin.f32 %v2247, %v2058
  %2249 = vmin.xlane.f32.xlu0 %v2248
  %v2250 = vpop.xlane.xlu0 %2249
  %v2251 = vmin.f32 %v2059, %v2060
  %v2252 = vmin.f32 %v2251, %v2061
  %2253 = vmin.xlane.f32.xlu0 %v2252
  %v2254 = vpop.xlane.xlu0 %2253
  %v2255 = vmin.f32 %v2062, %v2063
  %v2256 = vmin.f32 %v2255, %v2064
  %2257 = vmin.xlane.f32.xlu0 %v2256
  %v2258 = vpop.xlane.xlu0 %2257
  %v2259 = vmin.f32 %v2065, %v2066
  %v2260 = vmin.f32 %v2259, %v2067
  %2261 = vmin.xlane.f32.xlu0 %v2260
  %v2262 = vpop.xlane.xlu0 %2261
  %v2263 = vmin.f32 %v2068, %v2069
  %v2264 = vmin.f32 %v2263, %v2070
  %2265 = vmin.xlane.f32.xlu0 %v2264
  %v2266 = vpop.xlane.xlu0 %2265
  %v2267 = vmin.f32 %v2071, %v2072
  %v2268 = vmin.f32 %v2267, %v2073
  %2269 = vmin.xlane.f32.xlu0 %v2268
  %v2270 = vpop.xlane.xlu0 %2269
  %v2271 = vmin.f32 %v2074, %v2075
  %v2272 = vmin.f32 %v2271, %v2076
  %2273 = vmin.xlane.f32.xlu0 %v2272
  %v2274 = vpop.xlane.xlu0 %2273
  %v2275 = vmin.f32 %v2077, %v2078
  %v2276 = vmin.f32 %v2275, %v2079
  %2277 = vmin.xlane.f32.xlu0 %v2276
  %v2278 = vpop.xlane.xlu0 %2277
  %v2279 = vmin.f32 %v2080, %v2081
  %v2280 = vmin.f32 %v2279, %v2082
  %2281 = vmin.xlane.f32.xlu0 %v2280
  %v2282 = vpop.xlane.xlu0 %2281
  %v2283 = vmin.f32 %v1933, %v1936
  %v2284 = vmin.f32 %v2283, %v1939
  %v2285 = vmin.f32 %v2284, %v1942
  %v2286 = vmin.f32 %v2285, %v1945
  %v2287 = vmin.f32 %v2286, %v1948
  %v2288 = vmin.f32 %v2287, %v1951
  %v2289 = vmin.f32 %v2288, %v1954
  %v2290 = vmin.f32 %v2289, %v1957
  %v2291 = vmin.f32 %v2290, %v1960
  %v2292 = vmin.f32 %v2291, %v1963
  %v2293 = vmin.f32 %v2292, %v1966
  %v2294 = vmin.f32 %v2293, %v1969
  %v2295 = vmin.f32 %v2294, %v1972
  %v2296 = vmin.f32 %v2295, %v1975
  %v2297 = vmin.f32 %v2296, %v1978
  %v2298 = vmin.f32 %v2297, %v1981
  %v2299 = vmin.f32 %v2298, %v1984
  %v2300 = vmin.f32 %v2299, %v1987
  %v2301 = vmin.f32 %v2300, %v1990
  %v2302 = vmin.f32 %v2301, %v1993
  %v2303 = vmin.f32 %v2302, %v1996
  %v2304 = vmin.f32 %v2303, %v1999
  %v2305 = vmin.f32 %v2304, %v2002
  %v2306 = vmin.f32 %v2305, %v2005
  %v2307 = vrot.slane %v2306, 4
  %v2308 = vmin.f32 %v2306, %v2307
  %v2309 = vrot.slane %v2308, 2
  %v2310 = vmin.f32 %v2308, %v2309
  %v2311 = vrot.slane %v2310, 1
  %v2312 = vmin.f32 %v2310, %v2311
  %v2313 = vmin.f32 %v1934, %v1937
  %v2314 = vmin.f32 %v2313, %v1940
  %v2315 = vmin.f32 %v2314, %v1943
  %v2316 = vmin.f32 %v2315, %v1946
  %v2317 = vmin.f32 %v2316, %v1949
  %v2318 = vmin.f32 %v2317, %v1952
  %v2319 = vmin.f32 %v2318, %v1955
  %v2320 = vmin.f32 %v2319, %v1958
  %v2321 = vmin.f32 %v2320, %v1961
  %v2322 = vmin.f32 %v2321, %v1964
  %v2323 = vmin.f32 %v2322, %v1967
  %v2324 = vmin.f32 %v2323, %v1970
  %v2325 = vmin.f32 %v2324, %v1973
  %v2326 = vmin.f32 %v2325, %v1976
  %v2327 = vmin.f32 %v2326, %v1979
  %v2328 = vmin.f32 %v2327, %v1982
  %v2329 = vmin.f32 %v2328, %v1985
  %v2330 = vmin.f32 %v2329, %v1988
  %v2331 = vmin.f32 %v2330, %v1991
  %v2332 = vmin.f32 %v2331, %v1994
  %v2333 = vmin.f32 %v2332, %v1997
  %v2334 = vmin.f32 %v2333, %v2000
  %v2335 = vmin.f32 %v2334, %v2003
  %v2336 = vmin.f32 %v2335, %v2006
  %v2337 = vrot.slane %v2336, 4
  %v2338 = vmin.f32 %v2336, %v2337
  %v2339 = vrot.slane %v2338, 2
  %v2340 = vmin.f32 %v2338, %v2339
  %v2341 = vrot.slane %v2340, 1
  %v2342 = vmin.f32 %v2340, %v2341
  %v2343 = vmin.f32 %v1935, %v1938
  %v2344 = vmin.f32 %v2343, %v1941
  %v2345 = vmin.f32 %v2344, %v1944
  %v2346 = vmin.f32 %v2345, %v1947
  %v2347 = vmin.f32 %v2346, %v1950
  %v2348 = vmin.f32 %v2347, %v1953
  %v2349 = vmin.f32 %v2348, %v1956
  %v2350 = vmin.f32 %v2349, %v1959
  %v2351 = vmin.f32 %v2350, %v1962
  %v2352 = vmin.f32 %v2351, %v1965
  %v2353 = vmin.f32 %v2352, %v1968
  %v2354 = vmin.f32 %v2353, %v1971
  %v2355 = vmin.f32 %v2354, %v1974
  %v2356 = vmin.f32 %v2355, %v1977
  %v2357 = vmin.f32 %v2356, %v1980
  %v2358 = vmin.f32 %v2357, %v1983
  %v2359 = vmin.f32 %v2358, %v1986
  %v2360 = vmin.f32 %v2359, %v1989
  %v2361 = vmin.f32 %v2360, %v1992
  %v2362 = vmin.f32 %v2361, %v1995
  %v2363 = vmin.f32 %v2362, %v1998
  %v2364 = vmin.f32 %v2363, %v2001
  %v2365 = vmin.f32 %v2364, %v2004
  %v2366 = vmin.f32 %v2365, %v2007
  %v2367 = vrot.slane %v2366, 4
  %v2368 = vmin.f32 %v2366, %v2367
  %v2369 = vrot.slane %v2368, 2
  %v2370 = vmin.f32 %v2368, %v2369
  %v2371 = vrot.slane %v2370, 1
  %v2372 = vmin.f32 %v2370, %v2371
  %v2373 = vmin.f32 %v2008, %v2011
  %v2374 = vmin.f32 %v2373, %v2014
  %v2375 = vmin.f32 %v2374, %v2017
  %v2376 = vmin.f32 %v2375, %v2020
  %v2377 = vmin.f32 %v2376, %v2023
  %v2378 = vmin.f32 %v2377, %v2026
  %v2379 = vmin.f32 %v2378, %v2029
  %v2380 = vmin.f32 %v2379, %v2032
  %v2381 = vmin.f32 %v2380, %v2035
  %v2382 = vmin.f32 %v2381, %v2038
  %v2383 = vmin.f32 %v2382, %v2041
  %v2384 = vmin.f32 %v2383, %v2044
  %v2385 = vmin.f32 %v2384, %v2047
  %v2386 = vmin.f32 %v2385, %v2050
  %v2387 = vmin.f32 %v2386, %v2053
  %v2388 = vmin.f32 %v2387, %v2056
  %v2389 = vmin.f32 %v2388, %v2059
  %v2390 = vmin.f32 %v2389, %v2062
  %v2391 = vmin.f32 %v2390, %v2065
  %v2392 = vmin.f32 %v2391, %v2068
  %v2393 = vmin.f32 %v2392, %v2071
  %v2394 = vmin.f32 %v2393, %v2074
  %v2395 = vmin.f32 %v2394, %v2077
  %v2396 = vmin.f32 %v2395, %v2080
  %v2397 = vrot.slane %v2396, 4
  %v2398 = vmin.f32 %v2396, %v2397
  %v2399 = vrot.slane %v2398, 2
  %v2400 = vmin.f32 %v2398, %v2399
  %v2401 = vrot.slane %v2400, 1
  %v2402 = vmin.f32 %v2400, %v2401
  %v2403 = vmin.f32 %v2009, %v2012
  %v2404 = vmin.f32 %v2403, %v2015
  %v2405 = vmin.f32 %v2404, %v2018
  %v2406 = vmin.f32 %v2405, %v2021
  %v2407 = vmin.f32 %v2406, %v2024
  %v2408 = vmin.f32 %v2407, %v2027
  %v2409 = vmin.f32 %v2408, %v2030
  %v2410 = vmin.f32 %v2409, %v2033
  %v2411 = vmin.f32 %v2410, %v2036
  %v2412 = vmin.f32 %v2411, %v2039
  %v2413 = vmin.f32 %v2412, %v2042
  %v2414 = vmin.f32 %v2413, %v2045
  %v2415 = vmin.f32 %v2414, %v2048
  %v2416 = vmin.f32 %v2415, %v2051
  %v2417 = vmin.f32 %v2416, %v2054
  %v2418 = vmin.f32 %v2417, %v2057
  %v2419 = vmin.f32 %v2418, %v2060
  %v2420 = vmin.f32 %v2419, %v2063
  %v2421 = vmin.f32 %v2420, %v2066
  %v2422 = vmin.f32 %v2421, %v2069
  %v2423 = vmin.f32 %v2422, %v2072
  %v2424 = vmin.f32 %v2423, %v2075
  %v2425 = vmin.f32 %v2424, %v2078
  %v2426 = vmin.f32 %v2425, %v2081
  %v2427 = vrot.slane %v2426, 4
  %v2428 = vmin.f32 %v2426, %v2427
  %v2429 = vrot.slane %v2428, 2
  %v2430 = vmin.f32 %v2428, %v2429
  %v2431 = vrot.slane %v2430, 1
  %v2432 = vmin.f32 %v2430, %v2431
  %v2433 = vmin.f32 %v2010, %v2013
  %v2434 = vmin.f32 %v2433, %v2016
  %v2435 = vmin.f32 %v2434, %v2019
  %v2436 = vmin.f32 %v2435, %v2022
  %v2437 = vmin.f32 %v2436, %v2025
  %v2438 = vmin.f32 %v2437, %v2028
  %v2439 = vmin.f32 %v2438, %v2031
  %v2440 = vmin.f32 %v2439, %v2034
  %v2441 = vmin.f32 %v2440, %v2037
  %v2442 = vmin.f32 %v2441, %v2040
  %v2443 = vmin.f32 %v2442, %v2043
  %v2444 = vmin.f32 %v2443, %v2046
  %v2445 = vmin.f32 %v2444, %v2049
  %v2446 = vmin.f32 %v2445, %v2052
  %v2447 = vmin.f32 %v2446, %v2055
  %v2448 = vmin.f32 %v2447, %v2058
  %v2449 = vmin.f32 %v2448, %v2061
  %v2450 = vmin.f32 %v2449, %v2064
  %v2451 = vmin.f32 %v2450, %v2067
  %v2452 = vmin.f32 %v2451, %v2070
  %v2453 = vmin.f32 %v2452, %v2073
  %v2454 = vmin.f32 %v2453, %v2076
  %v2455 = vmin.f32 %v2454, %v2079
  %v2456 = vmin.f32 %v2455, %v2082
  %v2457 = vrot.slane %v2456, 4
  %v2458 = vmin.f32 %v2456, %v2457
  %v2459 = vrot.slane %v2458, 2
  %v2460 = vmin.f32 %v2458, %v2459
  %v2461 = vrot.slane %v2460, 1
  %v2462 = vmin.f32 %v2460, %v2461
  %v2463 = vlaneseq
  %v2464 = vand.u32 %v2463, 127
  %v2465 = vadd.s32 %v2464, 128
  %v2466 = vadd.s32 %v2464, 256
  %vm2467 = vcmp.lt.s32.totalorder %v2464, 300
  %vm2468 = vcmp.lt.s32.totalorder %v2465, 300
  %vm2469 = vcmp.lt.s32.totalorder %v2466, 300
  %v2470 = vsel %vm2467, 1, 0
  %v2471 = vsel %vm2468, 1, 0
  %v2472 = vsel %vm2469, 1, 0
  %vm2473 = vcmp.eq.s32.totalorder %v2470, 1
  %vm2474 = vcmp.eq.s32.totalorder %v2471, 1
  %vm2475 = vcmp.eq.s32.totalorder %v2472, 1
  %v2476 = vsel %vm2473, %v2312, 0.0
  %v2477 = vsel %vm2474, %v2342, 0.0
  %v2478 = vsel %vm2475, %v2372, 0.0
  %v2479 = vsel %vm2473, %v2402, 0.0
  %v2480 = vsel %vm2474, %v2432, 0.0
  %v2481 = vsel %vm2475, %v2462, 0.0
  %v2482 = vadd.f32 %v2086, %v2090
  %v2483 = vadd.f32 %v2482, %v2094
  %v2484 = vadd.f32 %v2483, %v2098
  %v2485 = vadd.f32 %v2484, %v2102
  %v2486 = vadd.f32 %v2485, %v2106
  %v2487 = vadd.f32 %v2486, %v2110
  %v2488 = vadd.f32 %v2487, %v2114
  %v2489 = vadd.f32 %v2488, %v2118
  %v2490 = vadd.f32 %v2489, %v2122
  %v2491 = vadd.f32 %v2490, %v2126
  %v2492 = vadd.f32 %v2491, %v2130
  %v2493 = vadd.f32 %v2492, %v2134
  %v2494 = vadd.f32 %v2493, %v2138
  %v2495 = vadd.f32 %v2494, %v2142
  %v2496 = vadd.f32 %v2495, %v2146
  %v2497 = vadd.f32 %v2496, %v2150
  %v2498 = vadd.f32 %v2497, %v2154
  %v2499 = vadd.f32 %v2498, %v2158
  %v2500 = vadd.f32 %v2499, %v2162
  %v2501 = vadd.f32 %v2500, %v2166
  %v2502 = vadd.f32 %v2501, %v2170
  %v2503 = vadd.f32 %v2502, %v2174
  %v2504 = vadd.f32 %v2503, %v2178
  %v2505 = vadd.f32 %v2504, %v2182
  %v2506 = vrot.slane %v2505, 4
  %v2507 = vadd.f32 %v2505, %v2506
  %v2508 = vrot.slane %v2507, 2
  %v2509 = vadd.f32 %v2507, %v2508
  %v2510 = vrot.slane %v2509, 1
  %v2511 = vadd.f32 %v2509, %v2510
  %v2512 = vadd.f32 %v2186, %v2190
  %v2513 = vadd.f32 %v2512, %v2194
  %v2514 = vadd.f32 %v2513, %v2198
  %v2515 = vadd.f32 %v2514, %v2202
  %v2516 = vadd.f32 %v2515, %v2206
  %v2517 = vadd.f32 %v2516, %v2210
  %v2518 = vadd.f32 %v2517, %v2214
  %v2519 = vadd.f32 %v2518, %v2218
  %v2520 = vadd.f32 %v2519, %v2222
  %v2521 = vadd.f32 %v2520, %v2226
  %v2522 = vadd.f32 %v2521, %v2230
  %v2523 = vadd.f32 %v2522, %v2234
  %v2524 = vadd.f32 %v2523, %v2238
  %v2525 = vadd.f32 %v2524, %v2242
  %v2526 = vadd.f32 %v2525, %v2246
  %v2527 = vadd.f32 %v2526, %v2250
  %v2528 = vadd.f32 %v2527, %v2254
  %v2529 = vadd.f32 %v2528, %v2258
  %v2530 = vadd.f32 %v2529, %v2262
  %v2531 = vadd.f32 %v2530, %v2266
  %v2532 = vadd.f32 %v2531, %v2270
  %v2533 = vadd.f32 %v2532, %v2274
  %v2534 = vadd.f32 %v2533, %v2278
  %v2535 = vadd.f32 %v2534, %v2282
  %v2536 = vrot.slane %v2535, 4
  %v2537 = vadd.f32 %v2535, %v2536
  %v2538 = vrot.slane %v2537, 2
  %v2539 = vadd.f32 %v2537, %v2538
  %v2540 = vrot.slane %v2539, 1
  %v2541 = vadd.f32 %v2539, %v2540
  %vm2542 = vcmask 0
  %2543 = vst.msk [vmem:[%s2] sm:$0x1] %vm2542, %v2511
  %2544 = vst.msk [vmem:[%s2 + $0x1] sm:$0x1] %vm2542, %v2541
  %v2545 = vadd.f32 %v2476, %v2477
  %v2546 = vadd.f32 %v2545, %v2478
  %2547 = vadd.xlane.f32.xlu0 %v2546
  %v2548 = vpop.xlane.xlu0 %2547
  %v2549 = vadd.f32 %v2479, %v2480
  %v2550 = vadd.f32 %v2549, %v2481
  %2551 = vadd.xlane.f32.xlu0 %v2550
  %v2552 = vpop.xlane.xlu0 %2551
  %2553 = vst.msk [vmem:[%s3] sm:$0x1] %vm2542, %v2548
  %2554 = vst.msk [vmem:[%s3 + $0x1] sm:$0x1] %vm2542, %v2552
  // Predicated region
  $region10: #{chamfer_distance_l2.1} parent=0 // pred_check
    _
  $region11: #{chamfer_distance_l2.1} parent=0 // pred_check_branch
    %2556 = sbr.rel (0) target = $region13
  $region12: #{chamfer_distance_l2.1} parent=0 // pred_region
    _
  $region13: #{chamfer_distance_l2.1} parent=0 // pred_fallthru
    _
  // Predicated region
  $region14: #{chamfer_distance_l2.1} parent=0 // pred_check
    _
  $region15: #{chamfer_distance_l2.1} parent=0 // pred_check_branch
    %2558 = sbr.rel (0) target = $region17
  $region16: #{chamfer_distance_l2.1} parent=0 // pred_region
    _
  $region17: #{chamfer_distance_l2.1} parent=0 // pred_fallthru
    _
  // Predicated region
  $region18: #{chamfer_distance_l2.1} parent=0 // pred_check
    _
  $region19: #{chamfer_distance_l2.1} parent=0 // pred_check_branch
    %2560 = sbr.rel (0) target = $region21
  $region20: #{chamfer_distance_l2.1} parent=0 // pred_region
    _
  $region21: #{chamfer_distance_l2.1} parent=0 // pred_fallthru
    _
  // Predicated region
  $region22: #{chamfer_distance_l2.1} parent=0 // pred_check
    _
  $region23: #{chamfer_distance_l2.1} parent=0 // pred_check_branch
    %2562 = sbr.rel (0) target = $region25
  $region24: #{chamfer_distance_l2.1} parent=0 // pred_region
    _
  $region25: #{chamfer_distance_l2.1} parent=0 // pred_fallthru
    _

</llo_original>
